<compile_context>
chip_gen: v5e
topology: v5e:2x2
jax: 0.10.0
libtpu: 0.0.40
codegen_flags: <defaults>
</compile_context>

<pallas_src>
import functools
import math

import jax
import jax.numpy as jnp
from jax import lax
from jax.experimental import pallas as pl
from jax.experimental.pallas import tpu as pltpu


def _layer_norm(y, g, b, eps=1e-5):
    mu = jnp.mean(y, axis=-1, keepdims=True)
    var = jnp.mean((y - mu) ** 2, axis=-1, keepdims=True)
    return (y - mu) * lax.rsqrt(var + eps) * g + b


def _tf_encoder_kernel(nhead, B, S, T, Fh, w_offs,
                       src_ref, pw_ref, init_ref, mask_ref,
                       w_ref, b_ref,
                       o_ref, attn_ref):
    l = pl.program_id(0)
    BT, D = o_ref.shape
    dh = D // nhead
    scale = 1.0 / math.sqrt(dh)
    off_qkv, off_wo, off_w1, off_w2 = w_offs

    # ---- fused PositionEncodingTraining, folded into the l == 0 iteration ----
    @pl.when(l == 0)
    def _():
        # one batched (B*S, F) @ (F, D) projection for the whole batch
        proj = jnp.dot(src_ref[...], pw_ref[...],
                       preferred_element_type=jnp.float32) + init_ref[0:1, :]
        cls_row = init_ref[1:2, :] + init_ref[2:3, :]          # cls + pos[0]
        pos_rest = init_ref[3:3 + S, :]                        # pos[1:T]
        for b in range(B):                                     # static, one-time writes
            o_ref[b * T:b * T + 1, :] = cls_row
            o_ref[b * T + 1:(b + 1) * T, :] = proj[b * S:(b + 1) * S, :] + pos_rest

    # output block doubles as the layer-resident activation (constant out index_map)
    x = o_ref[...]                                             # (B*T, D)

    # ---- per-layer bias / LayerNorm slab: one (8, 128) vreg, sliced with static offsets ----
    bias = b_ref[...]
    bqkv = bias[0:1, 0:3 * D]
    bo   = bias[1:2, 0:D]
    g1   = bias[2:3, 0:D]
    be1  = bias[3:4, 0:D]
    b1   = bias[4:5, 0:Fh]
    b2   = bias[5:6, 0:D]
    g2   = bias[6:7, 0:D]
    be2  = bias[7:8, 0:D]

    # ---- packed QKV projection for the whole batch (one matmul) ----
    qkv = jnp.dot(x, w_ref[:, off_qkv:off_qkv + 3 * D],
                  preferred_element_type=jnp.float32) + bqkv
    q = qkv[:, 0:D]
    k = qkv[:, D:2 * D]
    v = qkv[:, 2 * D:3 * D]

    mbias = mask_ref[...]          # additive causal + block-diagonal bias (hoisted, host-built)

    # ---- multi-head attention: heads assembled in VMEM scratch, single Wo matmul ----
    for h in range(nhead):                                     # static loop over heads
        sl = slice(h * dh, (h + 1) * dh)
        s = lax.dot_general(q[:, sl], k[:, sl], (((1,), (1,)), ((), ())),
                            preferred_element_type=jnp.float32) * scale + mbias
        m = jnp.max(s, axis=-1, keepdims=True)
        p = jnp.exp(s - m)
        p = p / jnp.sum(p, axis=-1, keepdims=True)             # exact softmax normalization
        attn_ref[:, sl] = jnp.dot(p, v[:, sl], preferred_element_type=jnp.float32)
    attn = jnp.dot(attn_ref[...], w_ref[:, off_wo:off_wo + D],
                   preferred_element_type=jnp.float32) + bo

    # ---- post-norm residual blocks (dropout = identity in eval mode) ----
    x1 = _layer_norm(x + attn, g1, be1)

    h1 = jnp.dot(x1, w_ref[:, off_w1:off_w1 + Fh],
                 preferred_element_type=jnp.float32) + b1
    h1 = 0.5 * h1 * (1.0 + lax.erf(h1 * jnp.float32(1.0 / math.sqrt(2.0))))   # exact GELU
    # w2 is stored transposed as (D, Fh); contract over the Fh axis of both operands
    ff = lax.dot_general(h1, w_ref[:, off_w2:off_w2 + Fh],
                         (((1,), (1,)), ((), ())),
                         preferred_element_type=jnp.float32) + b2

    o_ref[...] = _layer_norm(x1 + ff, g2, be2)     # carried to the next layer iteration


# ----------------------------------------------------------------------------
# Host-side parameter packing (17 streams -> 6)
# ----------------------------------------------------------------------------
def _ceil128(n):
    return ((n + 127) // 128) * 128


def _pack_weight_slab(wqkv, wo, w1, w2):
    """Pack per-layer weight matrices into one (L, D, W) slab; each matrix starts at a
    128-lane-aligned column offset (w2 stored transposed so all matrices have D rows)."""
    w2t = jnp.swapaxes(w2, 1, 2)                               # (L, D, Fh)
    parts = [wqkv, wo, w1, w2t]
    offs, padded, off = [], [], 0
    for p in parts:
        width = p.shape[2]
        slot = _ceil128(width)
        offs.append(off)
        padded.append(jnp.pad(p, ((0, 0), (0, 0), (0, slot - width))))
        off += slot
    return jnp.concatenate(padded, axis=2), tuple(offs)


def _pack_bias_slab(rows):
    """Pack 8 per-layer (L, 1, w<=128) vectors into one (L, 8, 128) slab (one vreg/layer)."""
    assert len(rows) == 8
    padded = [jnp.pad(r, ((0, 0), (0, 0), (0, 128 - r.shape[2]))) for r in rows]
    return jnp.concatenate(padded, axis=1)


def tf_encoder_forward(src, params, nhead):
    """src: (B, S, fea_size) float32 -> output: (B, S+1, d_model) float32."""
    B, S, F = src.shape
    D = params["proj_w"].shape[1]
    L = params["wqkv"].shape[0]
    Fh = params["w1"].shape[2]
    T = S + 1
    BT = B * T
    assert D % nhead == 0
    assert 3 * D <= 128 and Fh <= 128, "bias-slab packing assumes every vector fits in 128 lanes"

    # position embeddings: nn.Parameter(torch.zeros(1, num_patches+1, H)), sized to actual T
    pos_emb = jnp.zeros((T, D), jnp.float32)

    src2d = src.reshape(B * S, F)
    init_slab = jnp.concatenate([params["proj_b"], params["cls"], pos_emb], axis=0)  # (T+2, D)

    # additive causal + block-diagonal (per-batch-row) attention bias, built once on host
    r = jnp.arange(BT)[:, None]
    c = jnp.arange(BT)[None, :]
    mask_bias = jnp.where((c <= r) & ((r // T) == (c // T)), 0.0, -1e9).astype(jnp.float32)

    w_slab, w_offs = _pack_weight_slab(params["wqkv"], params["wo"],
                                       params["w1"], params["w2"])
    b_slab = _pack_bias_slab([params["bqkv"], params["bo"], params["g1"], params["be1"],
                              params["b1"], params["b2"], params["g2"], params["be2"]])
    W = w_slab.shape[2]

    kernel = functools.partial(_tf_encoder_kernel, nhead, B, S, T, Fh, w_offs)

    const2 = lambda l: (0, 0)
    per_layer = lambda l: (l, 0, 0)

    out2d = pl.pallas_call(
        kernel,
        out_shape=jax.ShapeDtypeStruct((BT, D), jnp.float32),
        grid=(L,),
        in_specs=[
            pl.BlockSpec((B * S, F), const2),       # flattened src
            pl.BlockSpec((F, D), const2),           # patch-projection weight
            pl.BlockSpec((T + 2, D), const2),       # [proj_b; cls; pos] init slab
            pl.BlockSpec((BT, BT), const2),         # additive attention bias (hoisted mask)
            pl.BlockSpec((None, D, W), per_layer),  # per-layer weight slab (leading dim squeezed)
            pl.BlockSpec((None, 8, 128), per_layer),# per-layer bias / LN slab
        ],
        out_specs=pl.BlockSpec((BT, D), const2),    # constant index -> VMEM-resident carry
        scratch_shapes=[pltpu.VMEM((BT, D), jnp.float32)],   # head-output assembly buffer
        compiler_params=pltpu.CompilerParams(
            dimension_semantics=("arbitrary",)),    # layer axis is sequential
    )(src2d, params["proj_w"], init_slab, mask_bias, w_slab, b_slab)

    return out2d.reshape(B, T, D)


# ----------------------------------------------------------------------------
# Parameter initialization (deterministic, synthetic), weights stacked per layer
# ----------------------------------------------------------------------------
def init_params(key, fea_size, d_model, dim_feedforward, num_layers):
    scale = 0.02
    D, Fh, L = d_model, dim_feedforward, num_layers
    n_rand = 6
    keys = jax.random.split(key, 2 + L * n_rand)

    def rnd(k, shape):
        return scale * jax.random.normal(k, shape, jnp.float32)

    params = {
        "proj_w": rnd(keys[0], (fea_size, D)),
        "proj_b": rnd(keys[1], (1, D)),
        "cls": jnp.ones((1, D), jnp.float32),      # nn.Parameter(torch.ones(1, 1, H))
    }

    wqkv, wo, w1, w2 = [], [], [], []
    kidx = 2
    for _ in range(L):
        wq = rnd(keys[kidx + 0], (D, D))
        wk = rnd(keys[kidx + 1], (D, D))
        wv = rnd(keys[kidx + 2], (D, D))
        wqkv.append(jnp.concatenate([wq, wk, wv], axis=1))     # packed (D, 3D)
        wo.append(rnd(keys[kidx + 3], (D, D)))
        w1.append(rnd(keys[kidx + 4], (D, Fh)))
        w2.append(rnd(keys[kidx + 5], (Fh, D)))
        kidx += n_rand

    params["wqkv"] = jnp.stack(wqkv, axis=0)                   # (L, D, 3D)
    params["bqkv"] = jnp.zeros((L, 1, 3 * D), jnp.float32)
    params["wo"] = jnp.stack(wo, axis=0)                       # (L, D, D)
    params["bo"] = jnp.zeros((L, 1, D), jnp.float32)
    params["g1"] = jnp.ones((L, 1, D), jnp.float32)
    params["be1"] = jnp.zeros((L, 1, D), jnp.float32)
    params["w1"] = jnp.stack(w1, axis=0)                       # (L, D, Fh)
    params["b1"] = jnp.zeros((L, 1, Fh), jnp.float32)
    params["w2"] = jnp.stack(w2, axis=0)                       # (L, Fh, D)
    params["b2"] = jnp.zeros((L, 1, D), jnp.float32)
    params["g2"] = jnp.ones((L, 1, D), jnp.float32)
    params["be2"] = jnp.zeros((L, 1, D), jnp.float32)
    return params


if __name__ == "__main__":
    # Small shapes consistent with the module's forward
    B, S = 2, 8            # batch, number of "patch" features
    FEA = 20               # vision_fea_dim
    D_MODEL = 32           # encoder_fea_dim / d_model
    NHEAD = 4
    DIM_FF = 64
    NUM_LAYERS = 2

    key = jax.random.PRNGKey(0)
    k_x, k_p = jax.random.split(key)
    src = jax.random.normal(k_x, (B, S, FEA), jnp.float32)
    params = init_params(k_p, FEA, D_MODEL, DIM_FF, NUM_LAYERS)

    out = tf_encoder_forward(src, params, NHEAD)
    out = jax.block_until_ready(out)
    assert out.shape == (B, S + 1, D_MODEL), out.shape
    assert bool(jnp.all(jnp.isfinite(out)))
    print("KERNEL_OK")
</pallas_src>

<mosaic_0001>
module attributes {stable_mosaic.version = 11 : i64} {
  func.func @_tf_encoder_kernel(%arg0: i32, %arg1: memref<16x20xf32, #tpu.memory_space<vmem>>, %arg2: memref<20x32xf32, #tpu.memory_space<vmem>>, %arg3: memref<11x32xf32, #tpu.memory_space<vmem>>, %arg4: memref<18x18xf32, #tpu.memory_space<vmem>>, %arg5: memref<1x32x512xf32, #tpu.memory_space<vmem>>, %arg6: memref<1x8x128xf32, #tpu.memory_space<vmem>>, %arg7: memref<18x32xf32, #tpu.memory_space<vmem>>, %arg8: memref<18x32xf32, #tpu.memory_space<vmem>>) attributes {dimension_semantics = [#tpu.dimension_semantics<arbitrary>], iteration_bounds = array<i64: 2>, scalar_prefetch = 0 : i64, scratch_operands = 1 : i64, tpu.core_type = #tpu.core_type<tc>, window_params = [{pipeline_mode = #tpu.pipeline_mode<synchronous>, transform_indices = @transform_0, window_bounds = array<i64: 16, 20>}, {pipeline_mode = #tpu.pipeline_mode<synchronous>, transform_indices = @transform_1, window_bounds = array<i64: 20, 32>}, {pipeline_mode = #tpu.pipeline_mode<synchronous>, transform_indices = @transform_2, window_bounds = array<i64: 11, 32>}, {pipeline_mode = #tpu.pipeline_mode<synchronous>, transform_indices = @transform_3, window_bounds = array<i64: 18, 18>}, {transform_indices = @transform_4, window_bounds = array<i64: 1, 32, 512>}, {transform_indices = @transform_5, window_bounds = array<i64: 1, 8, 128>}, {pipeline_mode = #tpu.pipeline_mode<synchronous>, transform_indices = @transform_6, window_bounds = array<i64: 18, 32>}]} {
    %c0_i32 = arith.constant 0 : i32
    %0 = arith.cmpi eq, %arg0, %c0_i32 : i32
    %1 = arith.extui %0 : i1 to i32
    %c0_i32_0 = arith.constant 0 : i32
    %2 = arith.cmpi ne, %1, %c0_i32_0 : i32
    scf.if %2 {
      %c0_61 = arith.constant 0 : index
      %c0_62 = arith.constant 0 : index
      %166 = vector.load %arg1[%c0_61, %c0_62] : memref<16x20xf32, #tpu.memory_space<vmem>>, vector<16x20xf32>
      %c0_63 = arith.constant 0 : index
      %c0_64 = arith.constant 0 : index
      %167 = vector.load %arg2[%c0_63, %c0_64] : memref<20x32xf32, #tpu.memory_space<vmem>>, vector<20x32xf32>
      %cst_65 = arith.constant dense<0.000000e+00> : vector<16x32xf32>
      %168 = tpu.matmul %166, %167, %cst_65 {dimension_numbers = #tpu.dot_dimension_numbers<[1], [0], [0], [1], [0, 0, 1, 1], [], []>} : vector<16x20xf32>, vector<20x32xf32>, vector<16x32xf32> -> vector<16x32xf32>
      %c0_66 = arith.constant 0 : index
      %c0_67 = arith.constant 0 : index
      %169 = vector.load %arg3[%c0_66, %c0_67] : memref<11x32xf32, #tpu.memory_space<vmem>>, vector<1x32xf32>
      %170 = vector.broadcast %169 : vector<1x32xf32> to vector<16x32xf32>
      %171 = arith.addf %168, %170 : vector<16x32xf32>
      %c1 = arith.constant 1 : index
      %c0_68 = arith.constant 0 : index
      %172 = vector.load %arg3[%c1, %c0_68] : memref<11x32xf32, #tpu.memory_space<vmem>>, vector<1x32xf32>
      %c2 = arith.constant 2 : index
      %c0_69 = arith.constant 0 : index
      %173 = vector.load %arg3[%c2, %c0_69] : memref<11x32xf32, #tpu.memory_space<vmem>>, vector<1x32xf32>
      %174 = arith.addf %172, %173 : vector<1x32xf32>
      %c3 = arith.constant 3 : index
      %c0_70 = arith.constant 0 : index
      %175 = vector.load %arg3[%c3, %c0_70] : memref<11x32xf32, #tpu.memory_space<vmem>>, vector<8x32xf32>
      %c0_71 = arith.constant 0 : index
      %c0_72 = arith.constant 0 : index
      %176 = vector.load %arg7[%c0_71, %c0_72] : memref<18x32xf32, #tpu.memory_space<vmem>>, vector<1x32xf32>
      tpu.vector_store %arg7[%c0_71, %c0_72], %174 {strides = array<i32>} : memref<18x32xf32, #tpu.memory_space<vmem>>, vector<1x32xf32>,
      %177 = vector.extract_strided_slice %171 {offsets = [0, 0], sizes = [8, 32], strides = [1, 1]} : vector<16x32xf32> to vector<8x32xf32>
      %178 = arith.addf %177, %175 : vector<8x32xf32>
      %c1_73 = arith.constant 1 : index
      %c0_74 = arith.constant 0 : index
      %179 = vector.load %arg7[%c1_73, %c0_74] : memref<18x32xf32, #tpu.memory_space<vmem>>, vector<8x32xf32>
      tpu.vector_store %arg7[%c1_73, %c0_74], %178 {strides = array<i32>} : memref<18x32xf32, #tpu.memory_space<vmem>>, vector<8x32xf32>,
      %c9 = arith.constant 9 : index
      %c0_75 = arith.constant 0 : index
      %180 = vector.load %arg7[%c9, %c0_75] : memref<18x32xf32, #tpu.memory_space<vmem>>, vector<1x32xf32>
      tpu.vector_store %arg7[%c9, %c0_75], %174 {strides = array<i32>} : memref<18x32xf32, #tpu.memory_space<vmem>>, vector<1x32xf32>,
      %181 = vector.extract_strided_slice %171 {offsets = [8, 0], sizes = [8, 32], strides = [1, 1]} : vector<16x32xf32> to vector<8x32xf32>
      %182 = arith.addf %181, %175 : vector<8x32xf32>
      %c10 = arith.constant 10 : index
      %c0_76 = arith.constant 0 : index
      %183 = vector.load %arg7[%c10, %c0_76] : memref<18x32xf32, #tpu.memory_space<vmem>>, vector<8x32xf32>
      tpu.vector_store %arg7[%c10, %c0_76], %182 {strides = array<i32>} : memref<18x32xf32, #tpu.memory_space<vmem>>, vector<8x32xf32>,
    } else {
    }
    %c0 = arith.constant 0 : index
    %c0_1 = arith.constant 0 : index
    %3 = vector.load %arg7[%c0, %c0_1] : memref<18x32xf32, #tpu.memory_space<vmem>>, vector<18x32xf32>
    %c0_2 = arith.constant 0 : index
    %c0_3 = arith.constant 0 : index
    %c0_4 = arith.constant 0 : index
    %4 = vector.load %arg6[%c0_2, %c0_3, %c0_4] : memref<1x8x128xf32, #tpu.memory_space<vmem>>, vector<1x8x128xf32>
    %5 = vector.shape_cast %4 : vector<1x8x128xf32> to vector<8x128xf32>
    %6 = vector.extract_strided_slice %5 {offsets = [0, 0], sizes = [1, 96], strides = [1, 1]} : vector<8x128xf32> to vector<1x96xf32>
    %7 = vector.extract_strided_slice %5 {offsets = [1, 0], sizes = [1, 32], strides = [1, 1]} : vector<8x128xf32> to vector<1x32xf32>
    %8 = vector.extract_strided_slice %5 {offsets = [2, 0], sizes = [1, 32], strides = [1, 1]} : vector<8x128xf32> to vector<1x32xf32>
    %9 = vector.extract_strided_slice %5 {offsets = [3, 0], sizes = [1, 32], strides = [1, 1]} : vector<8x128xf32> to vector<1x32xf32>
    %10 = vector.extract_strided_slice %5 {offsets = [4, 0], sizes = [1, 64], strides = [1, 1]} : vector<8x128xf32> to vector<1x64xf32>
    %11 = vector.extract_strided_slice %5 {offsets = [5, 0], sizes = [1, 32], strides = [1, 1]} : vector<8x128xf32> to vector<1x32xf32>
    %12 = vector.extract_strided_slice %5 {offsets = [6, 0], sizes = [1, 32], strides = [1, 1]} : vector<8x128xf32> to vector<1x32xf32>
    %13 = vector.extract_strided_slice %5 {offsets = [7, 0], sizes = [1, 32], strides = [1, 1]} : vector<8x128xf32> to vector<1x32xf32>
    %c0_5 = arith.constant 0 : index
    %c0_6 = arith.constant 0 : index
    %c0_7 = arith.constant 0 : index
    %14 = vector.load %arg5[%c0_5, %c0_6, %c0_7] : memref<1x32x512xf32, #tpu.memory_space<vmem>>, vector<1x32x96xf32>
    %15 = vector.shape_cast %14 : vector<1x32x96xf32> to vector<32x96xf32>
    %cst = arith.constant dense<0.000000e+00> : vector<18x96xf32>
    %16 = tpu.matmul %3, %15, %cst {dimension_numbers = #tpu.dot_dimension_numbers<[1], [0], [0], [1], [0, 0, 1, 1], [], []>} : vector<18x32xf32>, vector<32x96xf32>, vector<18x96xf32> -> vector<18x96xf32>
    %17 = vector.broadcast %6 : vector<1x96xf32> to vector<18x96xf32>
    %18 = arith.addf %16, %17 : vector<18x96xf32>
    %19 = vector.extract_strided_slice %18 {offsets = [0, 0], sizes = [18, 32], strides = [1, 1]} : vector<18x96xf32> to vector<18x32xf32>
    %20 = vector.extract_strided_slice %18 {offsets = [0, 32], sizes = [18, 32], strides = [1, 1]} : vector<18x96xf32> to vector<18x32xf32>
    %21 = vector.extract_strided_slice %18 {offsets = [0, 64], sizes = [18, 32], strides = [1, 1]} : vector<18x96xf32> to vector<18x32xf32>
    %c0_8 = arith.constant 0 : index
    %c0_9 = arith.constant 0 : index
    %22 = vector.load %arg4[%c0_8, %c0_9] : memref<18x18xf32, #tpu.memory_space<vmem>>, vector<18x18xf32>
    %23 = vector.extract_strided_slice %19 {offsets = [0, 0], sizes = [18, 8], strides = [1, 1]} : vector<18x32xf32> to vector<18x8xf32>
    %24 = vector.extract_strided_slice %20 {offsets = [0, 0], sizes = [18, 8], strides = [1, 1]} : vector<18x32xf32> to vector<18x8xf32>
    %cst_10 = arith.constant dense<0.000000e+00> : vector<18x18xf32>
    %25 = tpu.matmul %23, %24, %cst_10 {dimension_numbers = #tpu.dot_dimension_numbers<[1], [1], [0], [0], [0, 0, 1, 0], [], []>} : vector<18x8xf32>, vector<18x8xf32>, vector<18x18xf32> -> vector<18x18xf32>
    %cst_11 = arith.constant 0.353553385 : f32
    %26 = vector.broadcast %cst_11 : f32 to vector<18x18xf32>
    %27 = arith.mulf %25, %26 : vector<18x18xf32>
    %28 = arith.addf %27, %22 : vector<18x18xf32>
    %cst_12 = arith.constant dense<0xFF800000> : vector<18xf32>
    %29 = vector.multi_reduction <maximumf>, %28, %cst_12 [1] : vector<18x18xf32> to vector<18xf32>
    %30 = vector.shape_cast %29 : vector<18xf32> to vector<18x1xf32>
    %31 = vector.broadcast %30 : vector<18x1xf32> to vector<18x18xf32>
    %32 = arith.subf %28, %31 : vector<18x18xf32>
    %33 = math.exp %32 : vector<18x18xf32>
    %cst_13 = arith.constant dense<0.000000e+00> : vector<18xf32>
    %34 = vector.multi_reduction <add>, %33, %cst_13 [1] : vector<18x18xf32> to vector<18xf32>
    %35 = vector.shape_cast %34 : vector<18xf32> to vector<18x1xf32>
    %36 = vector.broadcast %35 : vector<18x1xf32> to vector<18x18xf32>
    %37 = arith.divf %33, %36 : vector<18x18xf32>
    %38 = vector.extract_strided_slice %21 {offsets = [0, 0], sizes = [18, 8], strides = [1, 1]} : vector<18x32xf32> to vector<18x8xf32>
    %cst_14 = arith.constant dense<0.000000e+00> : vector<18x8xf32>
    %39 = tpu.matmul %37, %38, %cst_14 {dimension_numbers = #tpu.dot_dimension_numbers<[1], [0], [0], [1], [0, 0, 1, 1], [], []>} : vector<18x18xf32>, vector<18x8xf32>, vector<18x8xf32> -> vector<18x8xf32>
    %c0_15 = arith.constant 0 : index
    %c0_16 = arith.constant 0 : index
    %40 = vector.load %arg8[%c0_15, %c0_16] : memref<18x32xf32, #tpu.memory_space<vmem>>, vector<18x8xf32>
    tpu.vector_store %arg8[%c0_15, %c0_16], %39 {strides = array<i32>} : memref<18x32xf32, #tpu.memory_space<vmem>>, vector<18x8xf32>,
    %41 = vector.extract_strided_slice %19 {offsets = [0, 8], sizes = [18, 8], strides = [1, 1]} : vector<18x32xf32> to vector<18x8xf32>
    %42 = vector.extract_strided_slice %20 {offsets = [0, 8], sizes = [18, 8], strides = [1, 1]} : vector<18x32xf32> to vector<18x8xf32>
    %cst_17 = arith.constant dense<0.000000e+00> : vector<18x18xf32>
    %43 = tpu.matmul %41, %42, %cst_17 {dimension_numbers = #tpu.dot_dimension_numbers<[1], [1], [0], [0], [0, 0, 1, 0], [], []>} : vector<18x8xf32>, vector<18x8xf32>, vector<18x18xf32> -> vector<18x18xf32>
    %cst_18 = arith.constant 0.353553385 : f32
    %44 = vector.broadcast %cst_18 : f32 to vector<18x18xf32>
    %45 = arith.mulf %43, %44 : vector<18x18xf32>
    %46 = arith.addf %45, %22 : vector<18x18xf32>
    %cst_19 = arith.constant dense<0xFF800000> : vector<18xf32>
    %47 = vector.multi_reduction <maximumf>, %46, %cst_19 [1] : vector<18x18xf32> to vector<18xf32>
    %48 = vector.shape_cast %47 : vector<18xf32> to vector<18x1xf32>
    %49 = vector.broadcast %48 : vector<18x1xf32> to vector<18x18xf32>
    %50 = arith.subf %46, %49 : vector<18x18xf32>
    %51 = math.exp %50 : vector<18x18xf32>
    %cst_20 = arith.constant dense<0.000000e+00> : vector<18xf32>
    %52 = vector.multi_reduction <add>, %51, %cst_20 [1] : vector<18x18xf32> to vector<18xf32>
    %53 = vector.shape_cast %52 : vector<18xf32> to vector<18x1xf32>
    %54 = vector.broadcast %53 : vector<18x1xf32> to vector<18x18xf32>
    %55 = arith.divf %51, %54 : vector<18x18xf32>
    %56 = vector.extract_strided_slice %21 {offsets = [0, 8], sizes = [18, 8], strides = [1, 1]} : vector<18x32xf32> to vector<18x8xf32>
    %cst_21 = arith.constant dense<0.000000e+00> : vector<18x8xf32>
    %57 = tpu.matmul %55, %56, %cst_21 {dimension_numbers = #tpu.dot_dimension_numbers<[1], [0], [0], [1], [0, 0, 1, 1], [], []>} : vector<18x18xf32>, vector<18x8xf32>, vector<18x8xf32> -> vector<18x8xf32>
    %c0_22 = arith.constant 0 : index
    %c8 = arith.constant 8 : index
    %58 = vector.load %arg8[%c0_22, %c8] : memref<18x32xf32, #tpu.memory_space<vmem>>, vector<18x8xf32>
    tpu.vector_store %arg8[%c0_22, %c8], %57 {strides = array<i32>} : memref<18x32xf32, #tpu.memory_space<vmem>>, vector<18x8xf32>,
    %59 = vector.extract_strided_slice %19 {offsets = [0, 16], sizes = [18, 8], strides = [1, 1]} : vector<18x32xf32> to vector<18x8xf32>
    %60 = vector.extract_strided_slice %20 {offsets = [0, 16], sizes = [18, 8], strides = [1, 1]} : vector<18x32xf32> to vector<18x8xf32>
    %cst_23 = arith.constant dense<0.000000e+00> : vector<18x18xf32>
    %61 = tpu.matmul %59, %60, %cst_23 {dimension_numbers = #tpu.dot_dimension_numbers<[1], [1], [0], [0], [0, 0, 1, 0], [], []>} : vector<18x8xf32>, vector<18x8xf32>, vector<18x18xf32> -> vector<18x18xf32>
    %cst_24 = arith.constant 0.353553385 : f32
    %62 = vector.broadcast %cst_24 : f32 to vector<18x18xf32>
    %63 = arith.mulf %61, %62 : vector<18x18xf32>
    %64 = arith.addf %63, %22 : vector<18x18xf32>
    %cst_25 = arith.constant dense<0xFF800000> : vector<18xf32>
    %65 = vector.multi_reduction <maximumf>, %64, %cst_25 [1] : vector<18x18xf32> to vector<18xf32>
    %66 = vector.shape_cast %65 : vector<18xf32> to vector<18x1xf32>
    %67 = vector.broadcast %66 : vector<18x1xf32> to vector<18x18xf32>
    %68 = arith.subf %64, %67 : vector<18x18xf32>
    %69 = math.exp %68 : vector<18x18xf32>
    %cst_26 = arith.constant dense<0.000000e+00> : vector<18xf32>
    %70 = vector.multi_reduction <add>, %69, %cst_26 [1] : vector<18x18xf32> to vector<18xf32>
    %71 = vector.shape_cast %70 : vector<18xf32> to vector<18x1xf32>
    %72 = vector.broadcast %71 : vector<18x1xf32> to vector<18x18xf32>
    %73 = arith.divf %69, %72 : vector<18x18xf32>
    %74 = vector.extract_strided_slice %21 {offsets = [0, 16], sizes = [18, 8], strides = [1, 1]} : vector<18x32xf32> to vector<18x8xf32>
    %cst_27 = arith.constant dense<0.000000e+00> : vector<18x8xf32>
    %75 = tpu.matmul %73, %74, %cst_27 {dimension_numbers = #tpu.dot_dimension_numbers<[1], [0], [0], [1], [0, 0, 1, 1], [], []>} : vector<18x18xf32>, vector<18x8xf32>, vector<18x8xf32> -> vector<18x8xf32>
    %c0_28 = arith.constant 0 : index
    %c16 = arith.constant 16 : index
    %76 = vector.load %arg8[%c0_28, %c16] : memref<18x32xf32, #tpu.memory_space<vmem>>, vector<18x8xf32>
    tpu.vector_store %arg8[%c0_28, %c16], %75 {strides = array<i32>} : memref<18x32xf32, #tpu.memory_space<vmem>>, vector<18x8xf32>,
    %77 = vector.extract_strided_slice %19 {offsets = [0, 24], sizes = [18, 8], strides = [1, 1]} : vector<18x32xf32> to vector<18x8xf32>
    %78 = vector.extract_strided_slice %20 {offsets = [0, 24], sizes = [18, 8], strides = [1, 1]} : vector<18x32xf32> to vector<18x8xf32>
    %cst_29 = arith.constant dense<0.000000e+00> : vector<18x18xf32>
    %79 = tpu.matmul %77, %78, %cst_29 {dimension_numbers = #tpu.dot_dimension_numbers<[1], [1], [0], [0], [0, 0, 1, 0], [], []>} : vector<18x8xf32>, vector<18x8xf32>, vector<18x18xf32> -> vector<18x18xf32>
    %cst_30 = arith.constant 0.353553385 : f32
    %80 = vector.broadcast %cst_30 : f32 to vector<18x18xf32>
    %81 = arith.mulf %79, %80 : vector<18x18xf32>
    %82 = arith.addf %81, %22 : vector<18x18xf32>
    %cst_31 = arith.constant dense<0xFF800000> : vector<18xf32>
    %83 = vector.multi_reduction <maximumf>, %82, %cst_31 [1] : vector<18x18xf32> to vector<18xf32>
    %84 = vector.shape_cast %83 : vector<18xf32> to vector<18x1xf32>
    %85 = vector.broadcast %84 : vector<18x1xf32> to vector<18x18xf32>
    %86 = arith.subf %82, %85 : vector<18x18xf32>
    %87 = math.exp %86 : vector<18x18xf32>
    %cst_32 = arith.constant dense<0.000000e+00> : vector<18xf32>
    %88 = vector.multi_reduction <add>, %87, %cst_32 [1] : vector<18x18xf32> to vector<18xf32>
    %89 = vector.shape_cast %88 : vector<18xf32> to vector<18x1xf32>
    %90 = vector.broadcast %89 : vector<18x1xf32> to vector<18x18xf32>
    %91 = arith.divf %87, %90 : vector<18x18xf32>
    %92 = vector.extract_strided_slice %21 {offsets = [0, 24], sizes = [18, 8], strides = [1, 1]} : vector<18x32xf32> to vector<18x8xf32>
    %cst_33 = arith.constant dense<0.000000e+00> : vector<18x8xf32>
    %93 = tpu.matmul %91, %92, %cst_33 {dimension_numbers = #tpu.dot_dimension_numbers<[1], [0], [0], [1], [0, 0, 1, 1], [], []>} : vector<18x18xf32>, vector<18x8xf32>, vector<18x8xf32> -> vector<18x8xf32>
    %c0_34 = arith.constant 0 : index
    %c24 = arith.constant 24 : index
    %94 = vector.load %arg8[%c0_34, %c24] : memref<18x32xf32, #tpu.memory_space<vmem>>, vector<18x8xf32>
    tpu.vector_store %arg8[%c0_34, %c24], %93 {strides = array<i32>} : memref<18x32xf32, #tpu.memory_space<vmem>>, vector<18x8xf32>,
    %c0_35 = arith.constant 0 : index
    %c0_36 = arith.constant 0 : index
    %95 = vector.load %arg8[%c0_35, %c0_36] : memref<18x32xf32, #tpu.memory_space<vmem>>, vector<18x32xf32>
    %c0_37 = arith.constant 0 : index
    %c0_38 = arith.constant 0 : index
    %c128 = arith.constant 128 : index
    %96 = vector.load %arg5[%c0_37, %c0_38, %c128] : memref<1x32x512xf32, #tpu.memory_space<vmem>>, vector<1x32x32xf32>
    %97 = vector.shape_cast %96 : vector<1x32x32xf32> to vector<32x32xf32>
    %cst_39 = arith.constant dense<0.000000e+00> : vector<18x32xf32>
    %98 = tpu.matmul %95, %97, %cst_39 {dimension_numbers = #tpu.dot_dimension_numbers<[1], [0], [0], [1], [0, 0, 1, 1], [], []>} : vector<18x32xf32>, vector<32x32xf32>, vector<18x32xf32> -> vector<18x32xf32>
    %99 = vector.broadcast %7 : vector<1x32xf32> to vector<18x32xf32>
    %100 = arith.addf %98, %99 : vector<18x32xf32>
    %101 = arith.addf %3, %100 : vector<18x32xf32>
    %cst_40 = arith.constant dense<0.000000e+00> : vector<18xf32>
    %102 = vector.multi_reduction <add>, %101, %cst_40 [1] : vector<18x32xf32> to vector<18xf32>
    %103 = vector.shape_cast %102 : vector<18xf32> to vector<18x1xf32>
    %cst_41 = arith.constant 3.200000e+01 : f32
    %104 = vector.broadcast %cst_41 : f32 to vector<18x1xf32>
    %105 = arith.divf %103, %104 : vector<18x1xf32>
    %106 = vector.broadcast %105 : vector<18x1xf32> to vector<18x32xf32>
    %107 = arith.subf %101, %106 : vector<18x32xf32>
    %108 = arith.mulf %107, %107 : vector<18x32xf32>
    %cst_42 = arith.constant dense<0.000000e+00> : vector<18xf32>
    %109 = vector.multi_reduction <add>, %108, %cst_42 [1] : vector<18x32xf32> to vector<18xf32>
    %110 = vector.shape_cast %109 : vector<18xf32> to vector<18x1xf32>
    %cst_43 = arith.constant 3.200000e+01 : f32
    %111 = vector.broadcast %cst_43 : f32 to vector<18x1xf32>
    %112 = arith.divf %110, %111 : vector<18x1xf32>
    %113 = vector.broadcast %105 : vector<18x1xf32> to vector<18x32xf32>
    %114 = arith.subf %101, %113 : vector<18x32xf32>
    %cst_44 = arith.constant 9.99999974E-6 : f32
    %115 = vector.broadcast %cst_44 : f32 to vector<18x1xf32>
    %116 = arith.addf %112, %115 : vector<18x1xf32>
    %117 = math.rsqrt %116 : vector<18x1xf32>
    %118 = vector.broadcast %117 : vector<18x1xf32> to vector<18x32xf32>
    %119 = arith.mulf %114, %118 : vector<18x32xf32>
    %120 = vector.broadcast %8 : vector<1x32xf32> to vector<18x32xf32>
    %121 = arith.mulf %119, %120 : vector<18x32xf32>
    %122 = vector.broadcast %9 : vector<1x32xf32> to vector<18x32xf32>
    %123 = arith.addf %121, %122 : vector<18x32xf32>
    %c0_45 = arith.constant 0 : index
    %c0_46 = arith.constant 0 : index
    %c256 = arith.constant 256 : index
    %124 = vector.load %arg5[%c0_45, %c0_46, %c256] : memref<1x32x512xf32, #tpu.memory_space<vmem>>, vector<1x32x64xf32>
    %125 = vector.shape_cast %124 : vector<1x32x64xf32> to vector<32x64xf32>
    %cst_47 = arith.constant dense<0.000000e+00> : vector<18x64xf32>
    %126 = tpu.matmul %123, %125, %cst_47 {dimension_numbers = #tpu.dot_dimension_numbers<[1], [0], [0], [1], [0, 0, 1, 1], [], []>} : vector<18x32xf32>, vector<32x64xf32>, vector<18x64xf32> -> vector<18x64xf32>
    %127 = vector.broadcast %10 : vector<1x64xf32> to vector<18x64xf32>
    %128 = arith.addf %126, %127 : vector<18x64xf32>
    %cst_48 = arith.constant 5.000000e-01 : f32
    %129 = vector.broadcast %cst_48 : f32 to vector<18x64xf32>
    %130 = arith.mulf %129, %128 : vector<18x64xf32>
    %cst_49 = arith.constant 0.707106769 : f32
    %131 = vector.broadcast %cst_49 : f32 to vector<18x64xf32>
    %132 = arith.mulf %128, %131 : vector<18x64xf32>
    %133 = math.erf %132 : vector<18x64xf32>
    %cst_50 = arith.constant 1.000000e+00 : f32
    %134 = vector.broadcast %cst_50 : f32 to vector<18x64xf32>
    %135 = arith.addf %134, %133 : vector<18x64xf32>
    %136 = arith.mulf %130, %135 : vector<18x64xf32>
    %c0_51 = arith.constant 0 : index
    %c0_52 = arith.constant 0 : index
    %c384 = arith.constant 384 : index
    %137 = vector.load %arg5[%c0_51, %c0_52, %c384] : memref<1x32x512xf32, #tpu.memory_space<vmem>>, vector<1x32x64xf32>
    %138 = vector.shape_cast %137 : vector<1x32x64xf32> to vector<32x64xf32>
    %cst_53 = arith.constant dense<0.000000e+00> : vector<18x32xf32>
    %139 = tpu.matmul %136, %138, %cst_53 {dimension_numbers = #tpu.dot_dimension_numbers<[1], [1], [0], [0], [0, 0, 1, 0], [], []>} : vector<18x64xf32>, vector<32x64xf32>, vector<18x32xf32> -> vector<18x32xf32>
    %140 = vector.broadcast %11 : vector<1x32xf32> to vector<18x32xf32>
    %141 = arith.addf %139, %140 : vector<18x32xf32>
    %142 = arith.addf %123, %141 : vector<18x32xf32>
    %cst_54 = arith.constant dense<0.000000e+00> : vector<18xf32>
    %143 = vector.multi_reduction <add>, %142, %cst_54 [1] : vector<18x32xf32> to vector<18xf32>
    %144 = vector.shape_cast %143 : vector<18xf32> to vector<18x1xf32>
    %cst_55 = arith.constant 3.200000e+01 : f32
    %145 = vector.broadcast %cst_55 : f32 to vector<18x1xf32>
    %146 = arith.divf %144, %145 : vector<18x1xf32>
    %147 = vector.broadcast %146 : vector<18x1xf32> to vector<18x32xf32>
    %148 = arith.subf %142, %147 : vector<18x32xf32>
    %149 = arith.mulf %148, %148 : vector<18x32xf32>
    %cst_56 = arith.constant dense<0.000000e+00> : vector<18xf32>
    %150 = vector.multi_reduction <add>, %149, %cst_56 [1] : vector<18x32xf32> to vector<18xf32>
    %151 = vector.shape_cast %150 : vector<18xf32> to vector<18x1xf32>
    %cst_57 = arith.constant 3.200000e+01 : f32
    %152 = vector.broadcast %cst_57 : f32 to vector<18x1xf32>
    %153 = arith.divf %151, %152 : vector<18x1xf32>
    %154 = vector.broadcast %146 : vector<18x1xf32> to vector<18x32xf32>
    %155 = arith.subf %142, %154 : vector<18x32xf32>
    %cst_58 = arith.constant 9.99999974E-6 : f32
    %156 = vector.broadcast %cst_58 : f32 to vector<18x1xf32>
    %157 = arith.addf %153, %156 : vector<18x1xf32>
    %158 = math.rsqrt %157 : vector<18x1xf32>
    %159 = vector.broadcast %158 : vector<18x1xf32> to vector<18x32xf32>
    %160 = arith.mulf %155, %159 : vector<18x32xf32>
    %161 = vector.broadcast %12 : vector<1x32xf32> to vector<18x32xf32>
    %162 = arith.mulf %160, %161 : vector<18x32xf32>
    %163 = vector.broadcast %13 : vector<1x32xf32> to vector<18x32xf32>
    %164 = arith.addf %162, %163 : vector<18x32xf32>
    %c0_59 = arith.constant 0 : index
    %c0_60 = arith.constant 0 : index
    %165 = vector.load %arg7[%c0_59, %c0_60] : memref<18x32xf32, #tpu.memory_space<vmem>>, vector<18x32xf32>
    tpu.vector_store %arg7[%c0_59, %c0_60], %164 {strides = array<i32>} : memref<18x32xf32, #tpu.memory_space<vmem>>, vector<18x32xf32>,
    return
  }
  func.func @transform_0(%arg0: i32) -> (i32, i32) {
    %c0_i32 = arith.constant 0 : i32
    %c0_i32_0 = arith.constant 0 : i32
    %c0_i32_1 = arith.constant 0 : i32
    return %c0_i32, %c0_i32_0 : i32, i32
  }
  func.func @transform_1(%arg0: i32) -> (i32, i32) {
    %c0_i32 = arith.constant 0 : i32
    %c0_i32_0 = arith.constant 0 : i32
    %c0_i32_1 = arith.constant 0 : i32
    return %c0_i32, %c0_i32_0 : i32, i32
  }
  func.func @transform_2(%arg0: i32) -> (i32, i32) {
    %c0_i32 = arith.constant 0 : i32
    %c0_i32_0 = arith.constant 0 : i32
    %c0_i32_1 = arith.constant 0 : i32
    return %c0_i32, %c0_i32_0 : i32, i32
  }
  func.func @transform_3(%arg0: i32) -> (i32, i32) {
    %c0_i32 = arith.constant 0 : i32
    %c0_i32_0 = arith.constant 0 : i32
    %c0_i32_1 = arith.constant 0 : i32
    return %c0_i32, %c0_i32_0 : i32, i32
  }
  func.func @transform_4(%arg0: i32) -> (i32, i32, i32) {
    %c0_i32 = arith.constant 0 : i32
    %c0_i32_0 = arith.constant 0 : i32
    %c0_i32_1 = arith.constant 0 : i32
    return %arg0, %c0_i32, %c0_i32_0 : i32, i32, i32
  }
  func.func @transform_5(%arg0: i32) -> (i32, i32, i32) {
    %c0_i32 = arith.constant 0 : i32
    %c0_i32_0 = arith.constant 0 : i32
    %c0_i32_1 = arith.constant 0 : i32
    return %arg0, %c0_i32, %c0_i32_0 : i32, i32, i32
  }
  func.func @transform_6(%arg0: i32) -> (i32, i32) {
    %c0_i32 = arith.constant 0 : i32
    %c0_i32_0 = arith.constant 0 : i32
    %c0_i32_1 = arith.constant 0 : i32
    return %c0_i32, %c0_i32_0 : i32, i32
  }
}

</mosaic_0001>

<llo_original>
// kernel: tpu_custom_call.1
$region0: #{tpu_custom_call.1}
  #allocation0 [shape = 'u32[]', space=smem, size = 0x4, offset = 0x4, fixed_abs, tag = 'smem constant byte address 0x4 - core index']
  #allocation1 [shape = 'u32[72,128]{1,0:T(1,128)}', space=vmem, size = 0x9000, scoped, tag = 'internal scratch']
  #allocation2 [shape = 'f32[18,32]{1,0:T(8,128)}', space=vmem, size = 0x3000, scoped, tag = 'scratch operand']
  %s0 = inlined_call_operand.hbm [shape: f32[16,20], index: 0, kind: input, shape index: {}]
  %s1 = inlined_call_operand.hbm [shape: f32[20,32], index: 1, kind: input, shape index: {}]
  %s2 = inlined_call_operand.hbm [shape: f32[11,32], index: 2, kind: input, shape index: {}]
  %s3 = inlined_call_operand.hbm [shape: f32[18,18], index: 3, kind: input, shape index: {}]
  %s4 = inlined_call_operand.hbm [shape: f32[2,32,512], index: 4, kind: input, shape index: {}]
  %s5 = inlined_call_operand.hbm [shape: f32[2,8,128], index: 5, kind: input, shape index: {}]
  %s6 = inlined_call_operand.hbm [shape: f32[18,32], index: 6, kind: output, shape index: {}]
  %s7 = sld [smem:[#allocation0]]
  $region85: #{tpu_custom_call.1} parent=0
    _
  %s9 = ssub.s32 1, %s7
  %s10 = scalar_select 0, %s9, %s7
  $region1: #{tpu_custom_call.1} parent=0
    #allocation3 [shape = 'u8[8192]{0}', space=vmem, size = 0x2000, scoped, tag = 'input window, operand 0, single buffered']
    #allocation4 [shape = 's32[2]{0}', space=sflag, size = 0x8, scoped, tag = 'scoped memory for tpu_custom_call.1']
    #allocation5 [shape = 's32[2]{0}', space=sflag, size = 0x8, scoped, tag = 'scoped memory for tpu_custom_call.1']
    #allocation6 [shape = 'u8[12288]{0}', space=vmem, size = 0x3000, scoped, tag = 'input window, operand 1, single buffered']
    #allocation7 [shape = 's32[1]{0}', space=sflag, size = 0x4, scoped, tag = 'scoped memory for tpu_custom_call.1']
    #allocation8 [shape = 'u8[8192]{0}', space=vmem, size = 0x2000, scoped, tag = 'input window, operand 2, single buffered']
    #allocation9 [shape = 'u8[12288]{0}', space=vmem, size = 0x3000, scoped, tag = 'input window, operand 3, single buffered']
    #allocation10 [shape = 's32[1]{0}', space=sflag, size = 0x4, scoped, tag = 'scoped memory for tpu_custom_call.1']
    #allocation11 [shape = 'u8[131072]{0}', space=vmem, size = 0x20000, scoped, tag = 'input window, operand 4']
    #allocation12 [shape = 'u8[8192]{0}', space=vmem, size = 0x2000, scoped, tag = 'input window, operand 5']
    #allocation13 [shape = 'u8[12288]{0}', space=vmem, size = 0x3000, scoped, tag = 'output window, operand 0, single buffered']
    %11 = vsyncpa [#allocation4], 0
    %12 = vsyncpa [#allocation7], 0
    %13 = vsyncpa [#allocation10], 0
    %14 = vsyncpa [#allocation5], 0
    loop: start=0, step=1, limit=4
    $region2: #{tpu_custom_call.1} parent=1 // loop_pre_header
      _
    $region3: #{tpu_custom_call.1} parent=1 // loop_header
      %s16 = sphi 0, %s20
      %p17 = scmp.ge.s32.totalorder %s16, 4
      %s24 = sphi 0, %s24
      %s26 = sphi 0, %s24
      %s27 = sphi 0, %s26
      %s41 = sphi 0, %s27
      %s45 = sphi 0, %s45
      %s47 = sphi 0, %s45
      %s48 = sphi 0, %s47
      %s62 = sphi 0, %s48
      %s66 = sphi 0, %s66
      %s68 = sphi 0, %s66
      %s69 = sphi 0, %s68
      %s83 = sphi 0, %s69
      %s87 = sphi 0, %s87
      %s89 = sphi 0, %s87
      %s90 = sphi 0, %s89
      %s104 = sphi 0, %s90
      %s110 = sphi 0, %s112
      %s113 = sphi 0, %s110
      %s114 = sphi 0, %s113
      %s130 = sphi 0, %s114
      %s136 = sphi 0, %s138
      %s139 = sphi 0, %s136
      %s140 = sphi 0, %s139
      %s156 = sphi 0, %s140
      %s160 = sphi 0, %s160
      %s162 = sphi 0, %s160
      %s163 = sphi 0, %s162
      %s177 = sphi 0, %s163
    $region4: #{tpu_custom_call.1} parent=1 // loop_header_branch
      %19 = sbr.rel (%p17) target = $region8
    $region5: #{tpu_custom_call.1} parent=1 // loop_body
      %s21 = ssub.s32 %s16, 1
      %s22 = ssub.s32 %s16, 2
      %s23 = sadd.s32 %s16, 1
      %s25 = sadd.s32 %s24, 1
      %p28 = scmp.eq.s32.totalorder %s16, 1
      %p29 = scmp.ne.s32.totalorder %s24, %s26
      %p30 = scmp.eq.s32.totalorder %s16, 0
      %p31 = por %p29, %p30
      %p32 = scmp.ne.s32.totalorder %s24, %s26
      %p33 = scmp.eq.s32.totalorder %s21, 1
      %p34 = por %p32, %p33
      %p35 = scmp.ne.s32.totalorder %s26, %s27
      %p36 = scmp.eq.s32.totalorder %s21, 0
      %p37 = por %p35, %p36
      %p38 = scmp.ne.s32.totalorder %s26, %s27
      %p39 = scmp.eq.s32.totalorder %s22, 1
      %p40 = por %p38, %p39
      %p42 = scmp.ne.s32.totalorder %s27, %s41
      %p43 = scmp.eq.s32.totalorder %s22, 0
      %p44 = por %p42, %p43
      %s46 = sadd.s32 %s45, 1
      %p49 = scmp.eq.s32.totalorder %s16, 1
      %p50 = scmp.ne.s32.totalorder %s45, %s47
      %p51 = scmp.eq.s32.totalorder %s16, 0
      %p52 = por %p50, %p51
      %p53 = scmp.ne.s32.totalorder %s45, %s47
      %p54 = scmp.eq.s32.totalorder %s21, 1
      %p55 = por %p53, %p54
      %p56 = scmp.ne.s32.totalorder %s47, %s48
      %p57 = scmp.eq.s32.totalorder %s21, 0
      %p58 = por %p56, %p57
      %p59 = scmp.ne.s32.totalorder %s47, %s48
      %p60 = scmp.eq.s32.totalorder %s22, 1
      %p61 = por %p59, %p60
      %p63 = scmp.ne.s32.totalorder %s48, %s62
      %p64 = scmp.eq.s32.totalorder %s22, 0
      %p65 = por %p63, %p64
      %s67 = sadd.s32 %s66, 1
      %p70 = scmp.eq.s32.totalorder %s16, 1
      %p71 = scmp.ne.s32.totalorder %s66, %s68
      %p72 = scmp.eq.s32.totalorder %s16, 0
      %p73 = por %p71, %p72
      %p74 = scmp.ne.s32.totalorder %s66, %s68
      %p75 = scmp.eq.s32.totalorder %s21, 1
      %p76 = por %p74, %p75
      %p77 = scmp.ne.s32.totalorder %s68, %s69
      %p78 = scmp.eq.s32.totalorder %s21, 0
      %p79 = por %p77, %p78
      %p80 = scmp.ne.s32.totalorder %s68, %s69
      %p81 = scmp.eq.s32.totalorder %s22, 1
      %p82 = por %p80, %p81
      %p84 = scmp.ne.s32.totalorder %s69, %s83
      %p85 = scmp.eq.s32.totalorder %s22, 0
      %p86 = por %p84, %p85
      %s88 = sadd.s32 %s87, 1
      %p91 = scmp.eq.s32.totalorder %s16, 1
      %p92 = scmp.ne.s32.totalorder %s87, %s89
      %p93 = scmp.eq.s32.totalorder %s16, 0
      %p94 = por %p92, %p93
      %p95 = scmp.ne.s32.totalorder %s87, %s89
      %p96 = scmp.eq.s32.totalorder %s21, 1
      %p97 = por %p95, %p96
      %p98 = scmp.ne.s32.totalorder %s89, %s90
      %p99 = scmp.eq.s32.totalorder %s21, 0
      %p100 = por %p98, %p99
      %p101 = scmp.ne.s32.totalorder %s89, %s90
      %p102 = scmp.eq.s32.totalorder %s22, 1
      %p103 = por %p101, %p102
      %p105 = scmp.ne.s32.totalorder %s90, %s104
      %p106 = scmp.eq.s32.totalorder %s22, 0
      %p107 = por %p105, %p106
      %s108 = ssub.s32 %s16, %s23
      %p109 = scmp.eq.s32.totalorder %s108, 0
      %s111 = sadd.s32 %s110, 1
      %s112 = scalar_select %p109, %s110, %s111
      %p115 = pneg %p109
      %p116 = scmp.eq.s32.totalorder %s16, 1
      %p117 = por %p115, %p116
      %p118 = scmp.ne.s32.totalorder %s110, %s113
      %p119 = scmp.eq.s32.totalorder %s16, 0
      %p120 = por %p118, %p119
      %p121 = scmp.ne.s32.totalorder %s110, %s113
      %p122 = scmp.eq.s32.totalorder %s21, 1
      %p123 = por %p121, %p122
      %p124 = scmp.ne.s32.totalorder %s113, %s114
      %p125 = scmp.eq.s32.totalorder %s21, 0
      %p126 = por %p124, %p125
      %p127 = scmp.ne.s32.totalorder %s113, %s114
      %p128 = scmp.eq.s32.totalorder %s22, 1
      %p129 = por %p127, %p128
      %p131 = scmp.ne.s32.totalorder %s114, %s130
      %p132 = scmp.eq.s32.totalorder %s22, 0
      %p133 = por %p131, %p132
      %s134 = ssub.s32 %s16, %s23
      %p135 = scmp.eq.s32.totalorder %s134, 0
      %s137 = sadd.s32 %s136, 1
      %s138 = scalar_select %p135, %s136, %s137
      %p141 = pneg %p135
      %p142 = scmp.eq.s32.totalorder %s16, 1
      %p143 = por %p141, %p142
      %p144 = scmp.ne.s32.totalorder %s136, %s139
      %p145 = scmp.eq.s32.totalorder %s16, 0
      %p146 = por %p144, %p145
      %p147 = scmp.ne.s32.totalorder %s136, %s139
      %p148 = scmp.eq.s32.totalorder %s21, 1
      %p149 = por %p147, %p148
      %p150 = scmp.ne.s32.totalorder %s139, %s140
      %p151 = scmp.eq.s32.totalorder %s21, 0
      %p152 = por %p150, %p151
      %p153 = scmp.ne.s32.totalorder %s139, %s140
      %p154 = scmp.eq.s32.totalorder %s22, 1
      %p155 = por %p153, %p154
      %p157 = scmp.ne.s32.totalorder %s140, %s156
      %p158 = scmp.eq.s32.totalorder %s22, 0
      %p159 = por %p157, %p158
      %s161 = sadd.s32 %s160, 1
      %p164 = scmp.eq.s32.totalorder %s16, 1
      %p165 = scmp.ne.s32.totalorder %s160, %s162
      %p166 = scmp.eq.s32.totalorder %s16, 0
      %p167 = por %p165, %p166
      %p168 = scmp.ne.s32.totalorder %s160, %s162
      %p169 = scmp.eq.s32.totalorder %s21, 1
      %p170 = por %p168, %p169
      %p171 = scmp.ne.s32.totalorder %s162, %s163
      %p172 = scmp.eq.s32.totalorder %s21, 0
      %p173 = por %p171, %p172
      %p174 = scmp.ne.s32.totalorder %s162, %s163
      %p175 = scmp.eq.s32.totalorder %s22, 1
      %p176 = por %p174, %p175
      %p178 = scmp.ne.s32.totalorder %s163, %s177
      %p179 = scmp.eq.s32.totalorder %s22, 0
      %p180 = por %p178, %p179
      %p181 = scmp.le.s32.totalorder 1, %s16
      %p182 = scmp.lt.s32.totalorder %s16, 3
      %p183 = pnand %p181, %p182
      %p184 = pneg %p183
      // Predicated region
      $region9: #{tpu_custom_call.1} parent=5 // pred_check
        _
      $region10: #{tpu_custom_call.1} parent=5 // pred_check_branch
        %186 = sbr.rel (%p183) target = $region12
      $region11: #{tpu_custom_call.1} parent=5 // pred_region
        %s187 = ssub.s32 %s16, 1
        // Predicated region
        $region13: #{tpu_custom_call.1} parent=11 // pred_check
          %p188 = pneg %p37
        $region14: #{tpu_custom_call.1} parent=11 // pred_check_branch
          %190 = sbr.rel (%p188) target = $region16
        $region15: #{tpu_custom_call.1} parent=11 // pred_region
          %192 = vsyncadd [#allocation4], 0
          %s193 = sshll.u32 %s0, 4
          %s194 = int_to_ptr.hbm [resolvable:$true] %s193
          %s195 = sshll.u32 [#allocation3], 4
          %s196 = int_to_ptr.vmem [resolvable:$true] %s195
          %201 = dma.hbm_to_vmem [thread:$0]  %s194, 256, %s196, [#allocation4], 128, 128, 8
        $region16: #{tpu_custom_call.1} parent=11 // pred_fallthru
          _
        // Predicated region
        $region17: #{tpu_custom_call.1} parent=11 // pred_check
          %p202 = pneg %p58
        $region18: #{tpu_custom_call.1} parent=11 // pred_check_branch
          %204 = sbr.rel (%p202) target = $region20
        $region19: #{tpu_custom_call.1} parent=11 // pred_region
          %206 = vsyncadd [#allocation7], 0
          %s207 = sshll.u32 %s1, 4
          %s208 = int_to_ptr.hbm [resolvable:$true] %s207
          %s209 = sshll.u32 [#allocation6], 4
          %s210 = int_to_ptr.vmem [resolvable:$true] %s209
          %215 = dma.hbm_to_vmem [thread:$0]  %s208, 384, %s210, [#allocation7], 128, 128, 8
        $region20: #{tpu_custom_call.1} parent=11 // pred_fallthru
          _
        // Predicated region
        $region21: #{tpu_custom_call.1} parent=11 // pred_check
          %p216 = pneg %p79
        $region22: #{tpu_custom_call.1} parent=11 // pred_check_branch
          %218 = sbr.rel (%p216) target = $region24
        $region23: #{tpu_custom_call.1} parent=11 // pred_region
          %220 = vsyncadd [#allocation7], 0
          %s221 = sshll.u32 %s2, 4
          %s222 = int_to_ptr.hbm [resolvable:$true] %s221
          %s223 = sshll.u32 [#allocation8], 4
          %s224 = int_to_ptr.vmem [resolvable:$true] %s223
          %229 = dma.hbm_to_vmem [thread:$0]  %s222, 256, %s224, [#allocation7], 128, 128, 8
        $region24: #{tpu_custom_call.1} parent=11 // pred_fallthru
          _
        // Predicated region
        $region25: #{tpu_custom_call.1} parent=11 // pred_check
          %p230 = pneg %p100
        $region26: #{tpu_custom_call.1} parent=11 // pred_check_branch
          %232 = sbr.rel (%p230) target = $region28
        $region27: #{tpu_custom_call.1} parent=11 // pred_region
          %234 = vsyncadd [#allocation10], 0
          %s235 = sshll.u32 %s3, 4
          %s236 = int_to_ptr.hbm [resolvable:$true] %s235
          %s237 = sshll.u32 [#allocation9], 4
          %s238 = int_to_ptr.vmem [resolvable:$true] %s237
          %243 = dma.hbm_to_vmem [thread:$0]  %s236, 384, %s238, [#allocation10], 128, 128, 8
        $region28: #{tpu_custom_call.1} parent=11 // pred_fallthru
          _
      $region12: #{tpu_custom_call.1} parent=5 // pred_fallthru
        _
      %p244 = scmp.lt.s32.totalorder %s16, 2
      // Predicated region
      $region29: #{tpu_custom_call.1} parent=5 // pred_check
        %p245 = pneg %p244
      $region30: #{tpu_custom_call.1} parent=5 // pred_check_branch
        %247 = sbr.rel (%p245) target = $region32
      $region31: #{tpu_custom_call.1} parent=5 // pred_region
        // Predicated region
        $region33: #{tpu_custom_call.1} parent=31 // pred_check
          %p248 = pneg %p120
        $region34: #{tpu_custom_call.1} parent=31 // pred_check_branch
          %250 = sbr.rel (%p248) target = $region36
        $region35: #{tpu_custom_call.1} parent=31 // pred_region
          %s251 = sand.u32 %s16, 1
          %s252 = scalar_lea.sflag [#allocation4], %s251
          %s253 = sand.u32 %s110, 1
          %s254 = smul.addr %s253, 128
          %s255 = scalar_lea.vmem [#allocation11], %s254
          %257 = vsyncadd %s252, 0
          %s258 = smul.addr %s16, 16
          %s259 = smul.addr %s258, 8
          %s260 = scalar_lea.hbm %s4, %s259
          %s261 = sshll.u32 %s260, 4
          %s262 = int_to_ptr.hbm [resolvable:$true] %s261
          %s263 = sshll.u32 %s255, 4
          %s264 = int_to_ptr.vmem [resolvable:$true] %s263
          %269 = dma.hbm_to_vmem [thread:$0]  %s262, 2048, %s264, %s252, 512, 512, 32
        $region36: #{tpu_custom_call.1} parent=31 // pred_fallthru
          _
        // Predicated region
        $region37: #{tpu_custom_call.1} parent=31 // pred_check
          %p270 = pneg %p146
        $region38: #{tpu_custom_call.1} parent=31 // pred_check_branch
          %272 = sbr.rel (%p270) target = $region40
        $region39: #{tpu_custom_call.1} parent=31 // pred_region
          %s273 = sand.u32 %s16, 1
          %s274 = scalar_lea.sflag [#allocation4], %s273
          %s275 = sand.u32 %s136, 1
          %s276 = smul.addr %s275, 8
          %s277 = scalar_lea.vmem [#allocation12], %s276
          %279 = vsyncadd %s274, 0
          %s280 = smul.addr %s16, 8
          %s281 = scalar_lea.hbm %s5, %s280
          %s283 = sshll.u32 %s281, 4
          %s284 = int_to_ptr.hbm [resolvable:$true] %s283
          %s285 = sshll.u32 %s277, 4
          %s286 = int_to_ptr.vmem [resolvable:$true] %s285
          %288 = dma.hbm_to_vmem [thread:$0]  %s284, 128, %s286, %s274
        $region40: #{tpu_custom_call.1} parent=31 // pred_fallthru
          _
      $region32: #{tpu_custom_call.1} parent=5 // pred_fallthru
        _
      %p289 = scmp.le.s32.totalorder 1, %s16
      %p290 = scmp.lt.s32.totalorder %s16, 3
      %p291 = pnand %p289, %p290
      %p292 = pneg %p291
      // Predicated region
      $region41: #{tpu_custom_call.1} parent=5 // pred_check
        _
      $region42: #{tpu_custom_call.1} parent=5 // pred_check_branch
        %294 = sbr.rel (%p291) target = $region44
      $region43: #{tpu_custom_call.1} parent=5 // pred_region
        %s295 = ssub.s32 %s16, 1
        // Predicated region
        $region45: #{tpu_custom_call.1} parent=43 // pred_check
          %p296 = pneg %p37
        $region46: #{tpu_custom_call.1} parent=43 // pred_check_branch
          %298 = sbr.rel (%p296) target = $region48
        $region47: #{tpu_custom_call.1} parent=43 // pred_region
          %300 = dma.done [#allocation4], 256
        $region48: #{tpu_custom_call.1} parent=43 // pred_fallthru
          _
        // Predicated region
        $region49: #{tpu_custom_call.1} parent=43 // pred_check
          %p301 = pneg %p58
        $region50: #{tpu_custom_call.1} parent=43 // pred_check_branch
          %303 = sbr.rel (%p301) target = $region52
        $region51: #{tpu_custom_call.1} parent=43 // pred_region
          %305 = dma.done [#allocation7], 384
        $region52: #{tpu_custom_call.1} parent=43 // pred_fallthru
          _
        // Predicated region
        $region53: #{tpu_custom_call.1} parent=43 // pred_check
          %p306 = pneg %p79
        $region54: #{tpu_custom_call.1} parent=43 // pred_check_branch
          %308 = sbr.rel (%p306) target = $region56
        $region55: #{tpu_custom_call.1} parent=43 // pred_region
          %310 = dma.done [#allocation7], 256
        $region56: #{tpu_custom_call.1} parent=43 // pred_fallthru
          _
        // Predicated region
        $region57: #{tpu_custom_call.1} parent=43 // pred_check
          %p311 = pneg %p100
        $region58: #{tpu_custom_call.1} parent=43 // pred_check_branch
          %313 = sbr.rel (%p311) target = $region60
        $region59: #{tpu_custom_call.1} parent=43 // pred_region
          %315 = dma.done [#allocation10], 384
        $region60: #{tpu_custom_call.1} parent=43 // pred_fallthru
          _
        %s316 = sand.u32 %s21, 1
        %s317 = scalar_lea.sflag [#allocation4], %s316
        %s318 = sand.u32 %s113, 1
        %s319 = smul.addr %s318, 128
        %s320 = scalar_lea.vmem [#allocation11], %s319
        // Predicated region
        $region61: #{tpu_custom_call.1} parent=43 // pred_check
          %p321 = pneg %p126
        $region62: #{tpu_custom_call.1} parent=43 // pred_check_branch
          %323 = sbr.rel (%p321) target = $region64
        $region63: #{tpu_custom_call.1} parent=43 // pred_region
          %325 = dma.done %s317, 2048
        $region64: #{tpu_custom_call.1} parent=43 // pred_fallthru
          _
        %s326 = sand.u32 %s21, 1
        %s327 = scalar_lea.sflag [#allocation4], %s326
        %s328 = sand.u32 %s139, 1
        %s329 = smul.addr %s328, 8
        %s330 = scalar_lea.vmem [#allocation12], %s329
        // Predicated region
        $region65: #{tpu_custom_call.1} parent=43 // pred_check
          %p331 = pneg %p152
        $region66: #{tpu_custom_call.1} parent=43 // pred_check_branch
          %333 = sbr.rel (%p331) target = $region68
        $region67: #{tpu_custom_call.1} parent=43 // pred_region
          %335 = dma.done %s327, 128
        $region68: #{tpu_custom_call.1} parent=43 // pred_fallthru
          _
        %p336 = pneg %p37
        %p337 = pneg %p34
        %p338 = pneg %p58
        %p339 = pneg %p55
        %p340 = pneg %p79
        %p341 = pneg %p76
        %p342 = pneg %p100
        %p343 = pneg %p97
        %s344 = sand.u32 %s21, 1
        %s345 = scalar_lea.sflag [#allocation4], %s344
        %s346 = sand.u32 %s113, 1
        %s347 = smul.addr %s346, 128
        %s348 = scalar_lea.vmem [#allocation11], %s347
        %p349 = pneg %p126
        %p350 = pneg %p123
        %s351 = sand.u32 %s21, 1
        %s352 = scalar_lea.sflag [#allocation4], %s351
        %s353 = sand.u32 %s139, 1
        %s354 = smul.addr %s353, 8
        %s355 = scalar_lea.vmem [#allocation12], %s354
        %p356 = pneg %p152
        %p357 = pneg %p149
        %p358 = pneg %p173
        %p359 = pneg %p170
        %p360 = scmp.eq.s32.totalorder %s21, 0
        // Predicated region
        $region69: #{tpu_custom_call.1} parent=43 // pred_check
          %p361 = pneg %p360
        $region70: #{tpu_custom_call.1} parent=43 // pred_check_branch
          %363 = sbr.rel (%p361) target = $region72
        $region71: #{tpu_custom_call.1} parent=43 // pred_region
          %v364 = vld [vmem:[#allocation3] sm:$0xff]
          %v365 = vld [vmem:[#allocation3 + $0x8] sm:$0xff]
          %v366 = vld [vmem:[#allocation6] sm:$0xff]
          %v367 = vld [vmem:[#allocation6 + $0x8] sm:$0xff]
          %v368 = vld [vmem:[#allocation6 + $0x10] sm:$0xf]
          %v369 = vld [vmem:[#allocation8] sm:$0x1]
          %v370 = vperm.slane %v369, 0
          %vm371 = vcmask 162816
          %v373 = vsel %vm371, %v364, 0
          %v376 = vsel %vm371, %v365, 0
          %vm378 = vcmask 1043456
          %v380 = vsel %vm378, %v368, 0
          %382 = vmatpush.msra.mxu0 0.0
          %383 = vmatpush.msra.mxu0 0.0
          %384 = vmatpush.msra.mxu0 0.0
          %385 = vmatpush.msra.mxu0 0.0
          %386 = vmatpush.msra.mxu0 0.0
          %387 = vmatpush.msra.mxu0 0.0
          %388 = vmatpush.msra.mxu0 0.0
          %389 = vmatpush.msra.mxu0 0.0
          %390 = vmatpush.msra.mxu0 0.0
          %391 = vmatpush.msra.mxu0 0.0
          %392 = vmatpush.msra.mxu0 0.0
          %393 = vmatpush.msra.mxu0 0.0
          %394 = vmatpush.msra.mxu0 0.0
          %395 = vmatpush.msra.mxu0 %v380
          %396 = vmatpush.msra.mxu0 %v367
          %397 = vmatpush.msra.mxu0 %v366
          %398 = vmatmul.f32.gmra.mxu0 %v373
          %v399 = vpop.f32.mrf.mxu0
          %v400 = vadd.f32 %v370, %v399
          %401 = vmatmul.f32.gmra.mxu0 %v376
          %v402 = vpop.f32.mrf.mxu0
          %v403 = vadd.f32 %v370, %v402
          %404 = vdwg.mxu0
          %v405 = vld [vmem:[#allocation8 + $0x1] sm:$0x1]
          %v406 = vld [vmem:[#allocation8 + $0x2] sm:$0x1]
          %v407 = vadd.f32 %v405, %v406
          %v408 = vld [vmem:[#allocation8 + $0x3] sm:$0xff]
          %vm409 = vcmask 253952
          %410 = vst.msk [vmem:[#allocation13] sm:$0x1] %vm409, %v407
          %v411 = vadd.f32 %v400, %v408
          %vm412 = vcmask 261120
          %413 = vst.msk [vmem:[#allocation13 + $0x1] sm:$0xff] %vm412, %v411
          %414 = vst.msk [vmem:[#allocation13 + $0x9] sm:$0x1] %vm409, %v407
          %v415 = vadd.f32 %v403, %v408
          %416 = vst.msk [vmem:[#allocation13 + $0xa] sm:$0xff] %vm412, %v415
        $region72: #{tpu_custom_call.1} parent=43 // pred_fallthru
          _
        %v417 = vld [vmem:[#allocation13] sm:$0xff]
        %v418 = vld [vmem:[#allocation13 + $0x8] sm:$0xff]
        %v419 = vld [vmem:[#allocation13 + $0x10] sm:$0x3]
        %v420 = vld [vmem:[%s330] sm:$0xff]
        %v421 = vld [vmem:[%s320] sm:$0xff]
        %v422 = vld [vmem:[%s320 + $0x20] sm:$0xff]
        %v423 = vld [vmem:[%s320 + $0x40] sm:$0xff]
        %v424 = vld [vmem:[%s320 + $0x60] sm:$0xff]
        %v425 = vperm.slane %v420, 0
        %vm426 = vcmask 261120
        %v428 = vsel %vm426, %v417, 0
        %v431 = vsel %vm426, %v418, 0
        %v434 = vsel %vm426, %v419, 0
        %436 = vmatpush.msra.mxu0 0.0
        %437 = vmatpush.msra.mxu0 0.0
        %438 = vmatpush.msra.mxu0 0.0
        %439 = vmatpush.msra.mxu0 0.0
        %440 = vmatpush.msra.mxu0 0.0
        %441 = vmatpush.msra.mxu0 0.0
        %442 = vmatpush.msra.mxu0 0.0
        %443 = vmatpush.msra.mxu0 0.0
        %444 = vmatpush.msra.mxu0 0.0
        %445 = vmatpush.msra.mxu0 0.0
        %446 = vmatpush.msra.mxu0 0.0
        %447 = vmatpush.msra.mxu0 0.0
        %448 = vmatpush.msra.mxu0 %v424
        %449 = vmatpush.msra.mxu0 %v423
        %450 = vmatpush.msra.mxu0 %v422
        %451 = vmatpush.msra.mxu0 %v421
        %452 = vmatmul.f32.gmra.mxu0 %v428
        %v453 = vpop.f32.mrf.mxu0
        %v454 = vadd.f32 %v425, %v453
        %455 = vmatmul.f32.gmra.mxu0 %v431
        %v456 = vpop.f32.mrf.mxu0
        %v457 = vadd.f32 %v425, %v456
        %458 = vmatmul.f32.gmra.mxu0 %v434
        %v459 = vpop.f32.mrf.mxu0
        %v460 = vadd.f32 %v425, %v459
        %461 = vdwg.mxu0
        %v462 = vld [vmem:[#allocation9] sm:$0xff]
        %v463 = vld [vmem:[#allocation9 + $0x8] sm:$0xff]
        %v464 = vld [vmem:[#allocation9 + $0x10] sm:$0x3]
        %468 = vrot.lane.b32.xlu0 %v454, 96
        %v469 = vpop.permute.xlu0 %468
        %470 = vrot.lane.b32.xlu0 %v457, 96
        %v471 = vpop.permute.xlu0 %470
        %472 = vrot.lane.b32.xlu0 %v460, 96
        %v473 = vpop.permute.xlu0 %472
        %vm474 = vcmask 64512
        %v475 = vsel %vm474, %v454, 0
        %v477 = vsel %vm474, %v457, 0
        %v479 = vsel %vm474, %v460, 0
        %v481 = vsel %vm474, %v469, 0
        %v483 = vsel %vm474, %v471, 0
        %v485 = vsel %vm474, %v473, 0
        %487 = vmatpush.xpose.msra.mxu0 0.0
        %488 = vmatpush.xpose.msra.mxu0 0.0
        %489 = vmatpush.xpose.msra.mxu0 0.0
        %490 = vmatpush.xpose.msra.mxu0 0.0
        %491 = vmatpush.xpose.msra.mxu0 0.0
        %492 = vmatpush.xpose.msra.mxu0 0.0
        %493 = vmatpush.xpose.msra.mxu0 0.0
        %494 = vmatpush.xpose.msra.mxu0 0.0
        %495 = vmatpush.xpose.msra.mxu0 0.0
        %496 = vmatpush.xpose.msra.mxu0 0.0
        %497 = vmatpush.xpose.msra.mxu0 0.0
        %498 = vmatpush.xpose.msra.mxu0 0.0
        %499 = vmatpush.xpose.msra.mxu0 0.0
        %500 = vmatpush.xpose.msra.mxu0 %v485
        %501 = vmatpush.xpose.msra.mxu0 %v483
        %502 = vmatpush.xpose.msra.mxu0 %v481
        %503 = vmatmul.f32.gmra.mxu0 %v475
        %v504 = vpop.f32.mrf.mxu0
        %v505 = vadd.f32 0.0, %v504
        %506 = vmatmul.f32.gmra.mxu0 %v477
        %v507 = vpop.f32.mrf.mxu0
        %v508 = vadd.f32 0.0, %v507
        %509 = vmatmul.f32.gmra.mxu0 %v479
        %v510 = vpop.f32.mrf.mxu0
        %v511 = vadd.f32 0.0, %v510
        %512 = vdwg.mxu0
        %v513 = vmul.f32 %v505, 0.35355338
        %v514 = vmul.f32 %v508, 0.35355338
        %v515 = vmul.f32 %v511, 0.35355338
        %v516 = vadd.f32 %v513, %v462
        %v517 = vadd.f32 %v514, %v463
        %v518 = vadd.f32 %v515, %v464
        %vm519 = vcmask 146432
        %v520 = vsel %vm519, %v516, -inf
        %521 = vmax.xlane.f32.xlu0 %v520
        %v522 = vpop.xlane.xlu0 %521
        %v523 = vsel %vm519, %v517, -inf
        %524 = vmax.xlane.f32.xlu0 %v523
        %v525 = vpop.xlane.xlu0 %524
        %vm526 = vcmask 140288
        %v527 = vsel %vm526, %v518, -inf
        %528 = vmax.xlane.f32.xlu0 %v527
        %v529 = vpop.xlane.xlu0 %528
        %v530 = vsub.f32 %v516, %v522
        %v531 = vsub.f32 %v517, %v525
        %v532 = vsub.f32 %v518, %v529
        %v533 = vmul.f32 %v530, 1.442695
        %v534 = vpow.pop %v533
        %v535 = vmul.f32 %v531, 1.442695
        %v536 = vpow.pop %v535
        %v537 = vmul.f32 %v532, 1.442695
        %v538 = vpow.pop %v537
        %v539 = vsel %vm519, %v534, 0.0
        %540 = vadd.xlane.f32.xlu0 %v539
        %v541 = vpop.xlane.xlu0 %540
        %v542 = vsel %vm519, %v536, 0.0
        %543 = vadd.xlane.f32.xlu0 %v542
        %v544 = vpop.xlane.xlu0 %543
        %v545 = vsel %vm526, %v538, 0.0
        %546 = vadd.xlane.f32.xlu0 %v545
        %v547 = vpop.xlane.xlu0 %546
        %v548 = vrcp.pop %v541
        %v549 = vmul.f32 %v541, %v548
        %v550 = vsub.f32 1.0, %v549
        %v551 = vmul.f32 %v548, %v550
        %v552 = vadd.f32 %v548, %v551
        %vm553 = vweird.f32 %v541
        %vm554 = vweird.f32 %v548
        %vm555 = vmor %vm553, %vm554
        %v556 = vsel %vm555, %v548, %v552
        %v557 = vand.u32 2147483647, %v541
        %vm558 = vcmp.eq.f32.partialorder %v557, 8.507059e+37
        %v559 = vand.u32 %v541, 2147483648
        %v560 = vor.u32 1.1754944e-38, %v559
        %v561 = vsel %vm558, %v560, %v556
        %v562 = vmul.f32 %v534, %v561
        %v563 = vrcp.pop %v544
        %v564 = vmul.f32 %v544, %v563
        %v565 = vsub.f32 1.0, %v564
        %v566 = vmul.f32 %v563, %v565
        %v567 = vadd.f32 %v563, %v566
        %vm568 = vweird.f32 %v544
        %vm569 = vweird.f32 %v563
        %vm570 = vmor %vm568, %vm569
        %v571 = vsel %vm570, %v563, %v567
        %v572 = vand.u32 2147483647, %v544
        %vm573 = vcmp.eq.f32.partialorder %v572, 8.507059e+37
        %v574 = vand.u32 %v544, 2147483648
        %v575 = vor.u32 1.1754944e-38, %v574
        %v576 = vsel %vm573, %v575, %v571
        %v577 = vmul.f32 %v536, %v576
        %v578 = vrcp.pop %v547
        %v579 = vmul.f32 %v547, %v578
        %v580 = vsub.f32 1.0, %v579
        %v581 = vmul.f32 %v578, %v580
        %v582 = vadd.f32 %v578, %v581
        %vm583 = vweird.f32 %v547
        %vm584 = vweird.f32 %v578
        %vm585 = vmor %vm583, %vm584
        %v586 = vsel %vm585, %v578, %v582
        %v587 = vand.u32 2147483647, %v547
        %vm588 = vcmp.eq.f32.partialorder %v587, 8.507059e+37
        %v589 = vand.u32 %v547, 2147483648
        %v590 = vor.u32 1.1754944e-38, %v589
        %v591 = vsel %vm588, %v590, %v586
        %v592 = vmul.f32 %v538, %v591
        %593 = vrot.lane.b32.xlu0 %v454, 64
        %v594 = vpop.permute.xlu0 %593
        %595 = vrot.lane.b32.xlu0 %v457, 64
        %v596 = vpop.permute.xlu0 %595
        %597 = vrot.lane.b32.xlu0 %v460, 64
        %v598 = vpop.permute.xlu0 %597
        %v602 = vsel %vm519, %v562, 0
        %v605 = vsel %vm519, %v577, 0
        %v608 = vsel %vm519, %v592, 0
        %vm610 = vcmask 1041408
        %v611 = vsel %vm610, %v598, 0
        %613 = vmatpush.msra.mxu0 0.0
        %614 = vmatpush.msra.mxu0 0.0
        %615 = vmatpush.msra.mxu0 0.0
        %616 = vmatpush.msra.mxu0 0.0
        %617 = vmatpush.msra.mxu0 0.0
        %618 = vmatpush.msra.mxu0 0.0
        %619 = vmatpush.msra.mxu0 0.0
        %620 = vmatpush.msra.mxu0 0.0
        %621 = vmatpush.msra.mxu0 0.0
        %622 = vmatpush.msra.mxu0 0.0
        %623 = vmatpush.msra.mxu0 0.0
        %624 = vmatpush.msra.mxu0 0.0
        %625 = vmatpush.msra.mxu0 0.0
        %626 = vmatpush.msra.mxu0 %v611
        %627 = vmatpush.msra.mxu0 %v596
        %628 = vmatpush.msra.mxu0 %v594
        %629 = vmatmul.f32.gmra.mxu0 %v602
        %v630 = vpop.f32.mrf.mxu0
        %v631 = vadd.f32 0.0, %v630
        %632 = vmatmul.f32.gmra.mxu0 %v605
        %v633 = vpop.f32.mrf.mxu0
        %v634 = vadd.f32 0.0, %v633
        %635 = vmatmul.f32.gmra.mxu0 %v608
        %v636 = vpop.f32.mrf.mxu0
        %v637 = vadd.f32 0.0, %v636
        %638 = vdwg.mxu0
        %639 = vst.msk [vmem:[#allocation2] sm:$0xff] %vm474, %v631
        %640 = vst.msk [vmem:[#allocation2 + $0x8] sm:$0xff] %vm474, %v634
        %vm641 = vcmask 58368
        %642 = vst.msk [vmem:[#allocation2 + $0x10] sm:$0x3] %vm641, %v637
        %643 = vrot.lane.b32.xlu0 %v454, 120
        %v644 = vpop.permute.xlu0 %643
        %645 = vrot.lane.b32.xlu0 %v457, 120
        %v646 = vpop.permute.xlu0 %645
        %647 = vrot.lane.b32.xlu0 %v460, 120
        %v648 = vpop.permute.xlu0 %647
        %649 = vrot.lane.b32.xlu0 %v454, 88
        %v650 = vpop.permute.xlu0 %649
        %651 = vrot.lane.b32.xlu0 %v457, 88
        %v652 = vpop.permute.xlu0 %651
        %653 = vrot.lane.b32.xlu0 %v460, 88
        %v654 = vpop.permute.xlu0 %653
        %v655 = vsel %vm474, %v644, 0
        %v657 = vsel %vm474, %v646, 0
        %v659 = vsel %vm474, %v648, 0
        %v661 = vsel %vm474, %v650, 0
        %v663 = vsel %vm474, %v652, 0
        %v665 = vsel %vm474, %v654, 0
        %667 = vmatpush.xpose.msra.mxu0 0.0
        %668 = vmatpush.xpose.msra.mxu0 0.0
        %669 = vmatpush.xpose.msra.mxu0 0.0
        %670 = vmatpush.xpose.msra.mxu0 0.0
        %671 = vmatpush.xpose.msra.mxu0 0.0
        %672 = vmatpush.xpose.msra.mxu0 0.0
        %673 = vmatpush.xpose.msra.mxu0 0.0
        %674 = vmatpush.xpose.msra.mxu0 0.0
        %675 = vmatpush.xpose.msra.mxu0 0.0
        %676 = vmatpush.xpose.msra.mxu0 0.0
        %677 = vmatpush.xpose.msra.mxu0 0.0
        %678 = vmatpush.xpose.msra.mxu0 0.0
        %679 = vmatpush.xpose.msra.mxu0 0.0
        %680 = vmatpush.xpose.msra.mxu0 %v665
        %681 = vmatpush.xpose.msra.mxu0 %v663
        %682 = vmatpush.xpose.msra.mxu0 %v661
        %683 = vmatmul.f32.gmra.mxu0 %v655
        %v684 = vpop.f32.mrf.mxu0
        %v685 = vadd.f32 0.0, %v684
        %686 = vmatmul.f32.gmra.mxu0 %v657
        %v687 = vpop.f32.mrf.mxu0
        %v688 = vadd.f32 0.0, %v687
        %689 = vmatmul.f32.gmra.mxu0 %v659
        %v690 = vpop.f32.mrf.mxu0
        %v691 = vadd.f32 0.0, %v690
        %692 = vdwg.mxu0
        %v693 = vmul.f32 %v685, 0.35355338
        %v694 = vmul.f32 %v688, 0.35355338
        %v695 = vmul.f32 %v691, 0.35355338
        %v696 = vadd.f32 %v693, %v462
        %v697 = vadd.f32 %v694, %v463
        %v698 = vadd.f32 %v695, %v464
        %v699 = vsel %vm519, %v696, -inf
        %700 = vmax.xlane.f32.xlu0 %v699
        %v701 = vpop.xlane.xlu0 %700
        %v702 = vsel %vm519, %v697, -inf
        %703 = vmax.xlane.f32.xlu0 %v702
        %v704 = vpop.xlane.xlu0 %703
        %v705 = vsel %vm526, %v698, -inf
        %706 = vmax.xlane.f32.xlu0 %v705
        %v707 = vpop.xlane.xlu0 %706
        %v708 = vsub.f32 %v696, %v701
        %v709 = vsub.f32 %v697, %v704
        %v710 = vsub.f32 %v698, %v707
        %v711 = vmul.f32 %v708, 1.442695
        %v712 = vpow.pop %v711
        %v713 = vmul.f32 %v709, 1.442695
        %v714 = vpow.pop %v713
        %v715 = vmul.f32 %v710, 1.442695
        %v716 = vpow.pop %v715
        %v717 = vsel %vm519, %v712, 0.0
        %718 = vadd.xlane.f32.xlu0 %v717
        %v719 = vpop.xlane.xlu0 %718
        %v720 = vsel %vm519, %v714, 0.0
        %721 = vadd.xlane.f32.xlu0 %v720
        %v722 = vpop.xlane.xlu0 %721
        %v723 = vsel %vm526, %v716, 0.0
        %724 = vadd.xlane.f32.xlu0 %v723
        %v725 = vpop.xlane.xlu0 %724
        %v726 = vrcp.pop %v719
        %v727 = vmul.f32 %v719, %v726
        %v728 = vsub.f32 1.0, %v727
        %v729 = vmul.f32 %v726, %v728
        %v730 = vadd.f32 %v726, %v729
        %vm731 = vweird.f32 %v719
        %vm732 = vweird.f32 %v726
        %vm733 = vmor %vm731, %vm732
        %v734 = vsel %vm733, %v726, %v730
        %v735 = vand.u32 2147483647, %v719
        %vm736 = vcmp.eq.f32.partialorder %v735, 8.507059e+37
        %v737 = vand.u32 %v719, 2147483648
        %v738 = vor.u32 1.1754944e-38, %v737
        %v739 = vsel %vm736, %v738, %v734
        %v740 = vmul.f32 %v712, %v739
        %v741 = vrcp.pop %v722
        %v742 = vmul.f32 %v722, %v741
        %v743 = vsub.f32 1.0, %v742
        %v744 = vmul.f32 %v741, %v743
        %v745 = vadd.f32 %v741, %v744
        %vm746 = vweird.f32 %v722
        %vm747 = vweird.f32 %v741
        %vm748 = vmor %vm746, %vm747
        %v749 = vsel %vm748, %v741, %v745
        %v750 = vand.u32 2147483647, %v722
        %vm751 = vcmp.eq.f32.partialorder %v750, 8.507059e+37
        %v752 = vand.u32 %v722, 2147483648
        %v753 = vor.u32 1.1754944e-38, %v752
        %v754 = vsel %vm751, %v753, %v749
        %v755 = vmul.f32 %v714, %v754
        %v756 = vrcp.pop %v725
        %v757 = vmul.f32 %v725, %v756
        %v758 = vsub.f32 1.0, %v757
        %v759 = vmul.f32 %v756, %v758
        %v760 = vadd.f32 %v756, %v759
        %vm761 = vweird.f32 %v725
        %vm762 = vweird.f32 %v756
        %vm763 = vmor %vm761, %vm762
        %v764 = vsel %vm763, %v756, %v760
        %v765 = vand.u32 2147483647, %v725
        %vm766 = vcmp.eq.f32.partialorder %v765, 8.507059e+37
        %v767 = vand.u32 %v725, 2147483648
        %v768 = vor.u32 1.1754944e-38, %v767
        %v769 = vsel %vm766, %v768, %v764
        %v770 = vmul.f32 %v716, %v769
        %771 = vrot.lane.b32.xlu0 %v454, 56
        %v772 = vpop.permute.xlu0 %771
        %773 = vrot.lane.b32.xlu0 %v457, 56
        %v774 = vpop.permute.xlu0 %773
        %775 = vrot.lane.b32.xlu0 %v460, 56
        %v776 = vpop.permute.xlu0 %775
        %v780 = vsel %vm519, %v740, 0
        %v783 = vsel %vm519, %v755, 0
        %v786 = vsel %vm519, %v770, 0
        %v788 = vsel %vm610, %v776, 0
        %790 = vmatpush.msra.mxu0 0.0
        %791 = vmatpush.msra.mxu0 0.0
        %792 = vmatpush.msra.mxu0 0.0
        %793 = vmatpush.msra.mxu0 0.0
        %794 = vmatpush.msra.mxu0 0.0
        %795 = vmatpush.msra.mxu0 0.0
        %796 = vmatpush.msra.mxu0 0.0
        %797 = vmatpush.msra.mxu0 0.0
        %798 = vmatpush.msra.mxu0 0.0
        %799 = vmatpush.msra.mxu0 0.0
        %800 = vmatpush.msra.mxu0 0.0
        %801 = vmatpush.msra.mxu0 0.0
        %802 = vmatpush.msra.mxu0 0.0
        %803 = vmatpush.msra.mxu0 %v788
        %804 = vmatpush.msra.mxu0 %v774
        %805 = vmatpush.msra.mxu0 %v772
        %806 = vmatmul.f32.gmra.mxu0 %v780
        %v807 = vpop.f32.mrf.mxu0
        %v808 = vadd.f32 0.0, %v807
        %809 = vmatmul.f32.gmra.mxu0 %v783
        %v810 = vpop.f32.mrf.mxu0
        %v811 = vadd.f32 0.0, %v810
        %812 = vmatmul.f32.gmra.mxu0 %v786
        %v813 = vpop.f32.mrf.mxu0
        %v814 = vadd.f32 0.0, %v813
        %815 = vdwg.mxu0
        %819 = vrot.lane.b32.xlu0 %v808, 8
        %v820 = vpop.permute.xlu0 %819
        %821 = vrot.lane.b32.xlu0 %v811, 8
        %v822 = vpop.permute.xlu0 %821
        %823 = vrot.lane.b32.xlu0 %v814, 8
        %v824 = vpop.permute.xlu0 %823
        %vm828 = vcmask 130112
        %829 = vst.msk [vmem:[#allocation2] sm:$0xff] %vm828, %v820
        %830 = vst.msk [vmem:[#allocation2 + $0x8] sm:$0xff] %vm828, %v822
        %vm831 = vcmask 123968
        %832 = vst.msk [vmem:[#allocation2 + $0x10] sm:$0x3] %vm831, %v824
        %833 = vrot.lane.b32.xlu0 %v454, 112
        %v834 = vpop.permute.xlu0 %833
        %835 = vrot.lane.b32.xlu0 %v457, 112
        %v836 = vpop.permute.xlu0 %835
        %837 = vrot.lane.b32.xlu0 %v460, 112
        %v838 = vpop.permute.xlu0 %837
        %839 = vrot.lane.b32.xlu0 %v454, 80
        %v840 = vpop.permute.xlu0 %839
        %841 = vrot.lane.b32.xlu0 %v457, 80
        %v842 = vpop.permute.xlu0 %841
        %843 = vrot.lane.b32.xlu0 %v460, 80
        %v844 = vpop.permute.xlu0 %843
        %v845 = vsel %vm474, %v834, 0
        %v847 = vsel %vm474, %v836, 0
        %v849 = vsel %vm474, %v838, 0
        %v851 = vsel %vm474, %v840, 0
        %v853 = vsel %vm474, %v842, 0
        %v855 = vsel %vm474, %v844, 0
        %857 = vmatpush.xpose.msra.mxu0 0.0
        %858 = vmatpush.xpose.msra.mxu0 0.0
        %859 = vmatpush.xpose.msra.mxu0 0.0
        %860 = vmatpush.xpose.msra.mxu0 0.0
        %861 = vmatpush.xpose.msra.mxu0 0.0
        %862 = vmatpush.xpose.msra.mxu0 0.0
        %863 = vmatpush.xpose.msra.mxu0 0.0
        %864 = vmatpush.xpose.msra.mxu0 0.0
        %865 = vmatpush.xpose.msra.mxu0 0.0
        %866 = vmatpush.xpose.msra.mxu0 0.0
        %867 = vmatpush.xpose.msra.mxu0 0.0
        %868 = vmatpush.xpose.msra.mxu0 0.0
        %869 = vmatpush.xpose.msra.mxu0 0.0
        %870 = vmatpush.xpose.msra.mxu0 %v855
        %871 = vmatpush.xpose.msra.mxu0 %v853
        %872 = vmatpush.xpose.msra.mxu0 %v851
        %873 = vmatmul.f32.gmra.mxu0 %v845
        %v874 = vpop.f32.mrf.mxu0
        %v875 = vadd.f32 0.0, %v874
        %876 = vmatmul.f32.gmra.mxu0 %v847
        %v877 = vpop.f32.mrf.mxu0
        %v878 = vadd.f32 0.0, %v877
        %879 = vmatmul.f32.gmra.mxu0 %v849
        %v880 = vpop.f32.mrf.mxu0
        %v881 = vadd.f32 0.0, %v880
        %882 = vdwg.mxu0
        %v883 = vmul.f32 %v875, 0.35355338
        %v884 = vmul.f32 %v878, 0.35355338
        %v885 = vmul.f32 %v881, 0.35355338
        %v886 = vadd.f32 %v883, %v462
        %v887 = vadd.f32 %v884, %v463
        %v888 = vadd.f32 %v885, %v464
        %v889 = vsel %vm519, %v886, -inf
        %890 = vmax.xlane.f32.xlu0 %v889
        %v891 = vpop.xlane.xlu0 %890
        %v892 = vsel %vm519, %v887, -inf
        %893 = vmax.xlane.f32.xlu0 %v892
        %v894 = vpop.xlane.xlu0 %893
        %v895 = vsel %vm526, %v888, -inf
        %896 = vmax.xlane.f32.xlu0 %v895
        %v897 = vpop.xlane.xlu0 %896
        %v898 = vsub.f32 %v886, %v891
        %v899 = vsub.f32 %v887, %v894
        %v900 = vsub.f32 %v888, %v897
        %v901 = vmul.f32 %v898, 1.442695
        %v902 = vpow.pop %v901
        %v903 = vmul.f32 %v899, 1.442695
        %v904 = vpow.pop %v903
        %v905 = vmul.f32 %v900, 1.442695
        %v906 = vpow.pop %v905
        %v907 = vsel %vm519, %v902, 0.0
        %908 = vadd.xlane.f32.xlu0 %v907
        %v909 = vpop.xlane.xlu0 %908
        %v910 = vsel %vm519, %v904, 0.0
        %911 = vadd.xlane.f32.xlu0 %v910
        %v912 = vpop.xlane.xlu0 %911
        %v913 = vsel %vm526, %v906, 0.0
        %914 = vadd.xlane.f32.xlu0 %v913
        %v915 = vpop.xlane.xlu0 %914
        %v916 = vrcp.pop %v909
        %v917 = vmul.f32 %v909, %v916
        %v918 = vsub.f32 1.0, %v917
        %v919 = vmul.f32 %v916, %v918
        %v920 = vadd.f32 %v916, %v919
        %vm921 = vweird.f32 %v909
        %vm922 = vweird.f32 %v916
        %vm923 = vmor %vm921, %vm922
        %v924 = vsel %vm923, %v916, %v920
        %v925 = vand.u32 2147483647, %v909
        %vm926 = vcmp.eq.f32.partialorder %v925, 8.507059e+37
        %v927 = vand.u32 %v909, 2147483648
        %v928 = vor.u32 1.1754944e-38, %v927
        %v929 = vsel %vm926, %v928, %v924
        %v930 = vmul.f32 %v902, %v929
        %v931 = vrcp.pop %v912
        %v932 = vmul.f32 %v912, %v931
        %v933 = vsub.f32 1.0, %v932
        %v934 = vmul.f32 %v931, %v933
        %v935 = vadd.f32 %v931, %v934
        %vm936 = vweird.f32 %v912
        %vm937 = vweird.f32 %v931
        %vm938 = vmor %vm936, %vm937
        %v939 = vsel %vm938, %v931, %v935
        %v940 = vand.u32 2147483647, %v912
        %vm941 = vcmp.eq.f32.partialorder %v940, 8.507059e+37
        %v942 = vand.u32 %v912, 2147483648
        %v943 = vor.u32 1.1754944e-38, %v942
        %v944 = vsel %vm941, %v943, %v939
        %v945 = vmul.f32 %v904, %v944
        %v946 = vrcp.pop %v915
        %v947 = vmul.f32 %v915, %v946
        %v948 = vsub.f32 1.0, %v947
        %v949 = vmul.f32 %v946, %v948
        %v950 = vadd.f32 %v946, %v949
        %vm951 = vweird.f32 %v915
        %vm952 = vweird.f32 %v946
        %vm953 = vmor %vm951, %vm952
        %v954 = vsel %vm953, %v946, %v950
        %v955 = vand.u32 2147483647, %v915
        %vm956 = vcmp.eq.f32.partialorder %v955, 8.507059e+37
        %v957 = vand.u32 %v915, 2147483648
        %v958 = vor.u32 1.1754944e-38, %v957
        %v959 = vsel %vm956, %v958, %v954
        %v960 = vmul.f32 %v906, %v959
        %961 = vrot.lane.b32.xlu0 %v454, 48
        %v962 = vpop.permute.xlu0 %961
        %963 = vrot.lane.b32.xlu0 %v457, 48
        %v964 = vpop.permute.xlu0 %963
        %965 = vrot.lane.b32.xlu0 %v460, 48
        %v966 = vpop.permute.xlu0 %965
        %v970 = vsel %vm519, %v930, 0
        %v973 = vsel %vm519, %v945, 0
        %v976 = vsel %vm519, %v960, 0
        %v978 = vsel %vm610, %v966, 0
        %980 = vmatpush.msra.mxu0 0.0
        %981 = vmatpush.msra.mxu0 0.0
        %982 = vmatpush.msra.mxu0 0.0
        %983 = vmatpush.msra.mxu0 0.0
        %984 = vmatpush.msra.mxu0 0.0
        %985 = vmatpush.msra.mxu0 0.0
        %986 = vmatpush.msra.mxu0 0.0
        %987 = vmatpush.msra.mxu0 0.0
        %988 = vmatpush.msra.mxu0 0.0
        %989 = vmatpush.msra.mxu0 0.0
        %990 = vmatpush.msra.mxu0 0.0
        %991 = vmatpush.msra.mxu0 0.0
        %992 = vmatpush.msra.mxu0 0.0
        %993 = vmatpush.msra.mxu0 %v978
        %994 = vmatpush.msra.mxu0 %v964
        %995 = vmatpush.msra.mxu0 %v962
        %996 = vmatmul.f32.gmra.mxu0 %v970
        %v997 = vpop.f32.mrf.mxu0
        %v998 = vadd.f32 0.0, %v997
        %999 = vmatmul.f32.gmra.mxu0 %v973
        %v1000 = vpop.f32.mrf.mxu0
        %v1001 = vadd.f32 0.0, %v1000
        %1002 = vmatmul.f32.gmra.mxu0 %v976
        %v1003 = vpop.f32.mrf.mxu0
        %v1004 = vadd.f32 0.0, %v1003
        %1005 = vdwg.mxu0
        %1009 = vrot.lane.b32.xlu0 %v998, 16
        %v1010 = vpop.permute.xlu0 %1009
        %1011 = vrot.lane.b32.xlu0 %v1001, 16
        %v1012 = vpop.permute.xlu0 %1011
        %1013 = vrot.lane.b32.xlu0 %v1004, 16
        %v1014 = vpop.permute.xlu0 %1013
        %vm1018 = vcmask 195712
        %1019 = vst.msk [vmem:[#allocation2] sm:$0xff] %vm1018, %v1010
        %1020 = vst.msk [vmem:[#allocation2 + $0x8] sm:$0xff] %vm1018, %v1012
        %vm1021 = vcmask 189568
        %1022 = vst.msk [vmem:[#allocation2 + $0x10] sm:$0x3] %vm1021, %v1014
        %1023 = vrot.lane.b32.xlu0 %v454, 104
        %v1024 = vpop.permute.xlu0 %1023
        %1025 = vrot.lane.b32.xlu0 %v457, 104
        %v1026 = vpop.permute.xlu0 %1025
        %1027 = vrot.lane.b32.xlu0 %v460, 104
        %v1028 = vpop.permute.xlu0 %1027
        %1029 = vrot.lane.b32.xlu0 %v454, 72
        %v1030 = vpop.permute.xlu0 %1029
        %1031 = vrot.lane.b32.xlu0 %v457, 72
        %v1032 = vpop.permute.xlu0 %1031
        %1033 = vrot.lane.b32.xlu0 %v460, 72
        %v1034 = vpop.permute.xlu0 %1033
        %v1035 = vsel %vm474, %v1024, 0
        %v1037 = vsel %vm474, %v1026, 0
        %v1039 = vsel %vm474, %v1028, 0
        %v1041 = vsel %vm474, %v1030, 0
        %v1043 = vsel %vm474, %v1032, 0
        %v1045 = vsel %vm474, %v1034, 0
        %1047 = vmatpush.xpose.msra.mxu0 0.0
        %1048 = vmatpush.xpose.msra.mxu0 0.0
        %1049 = vmatpush.xpose.msra.mxu0 0.0
        %1050 = vmatpush.xpose.msra.mxu0 0.0
        %1051 = vmatpush.xpose.msra.mxu0 0.0
        %1052 = vmatpush.xpose.msra.mxu0 0.0
        %1053 = vmatpush.xpose.msra.mxu0 0.0
        %1054 = vmatpush.xpose.msra.mxu0 0.0
        %1055 = vmatpush.xpose.msra.mxu0 0.0
        %1056 = vmatpush.xpose.msra.mxu0 0.0
        %1057 = vmatpush.xpose.msra.mxu0 0.0
        %1058 = vmatpush.xpose.msra.mxu0 0.0
        %1059 = vmatpush.xpose.msra.mxu0 0.0
        %1060 = vmatpush.xpose.msra.mxu0 %v1045
        %1061 = vmatpush.xpose.msra.mxu0 %v1043
        %1062 = vmatpush.xpose.msra.mxu0 %v1041
        %1063 = vmatmul.f32.gmra.mxu0 %v1035
        %v1064 = vpop.f32.mrf.mxu0
        %v1065 = vadd.f32 0.0, %v1064
        %1066 = vmatmul.f32.gmra.mxu0 %v1037
        %v1067 = vpop.f32.mrf.mxu0
        %v1068 = vadd.f32 0.0, %v1067
        %1069 = vmatmul.f32.gmra.mxu0 %v1039
        %v1070 = vpop.f32.mrf.mxu0
        %v1071 = vadd.f32 0.0, %v1070
        %1072 = vdwg.mxu0
        %v1073 = vmul.f32 %v1065, 0.35355338
        %v1074 = vmul.f32 %v1068, 0.35355338
        %v1075 = vmul.f32 %v1071, 0.35355338
        %v1076 = vadd.f32 %v1073, %v462
        %v1077 = vadd.f32 %v1074, %v463
        %v1078 = vadd.f32 %v1075, %v464
        %v1079 = vsel %vm519, %v1076, -inf
        %1080 = vmax.xlane.f32.xlu0 %v1079
        %v1081 = vpop.xlane.xlu0 %1080
        %v1082 = vsel %vm519, %v1077, -inf
        %1083 = vmax.xlane.f32.xlu0 %v1082
        %v1084 = vpop.xlane.xlu0 %1083
        %v1085 = vsel %vm526, %v1078, -inf
        %1086 = vmax.xlane.f32.xlu0 %v1085
        %v1087 = vpop.xlane.xlu0 %1086
        %v1088 = vsub.f32 %v1076, %v1081
        %v1089 = vsub.f32 %v1077, %v1084
        %v1090 = vsub.f32 %v1078, %v1087
        %v1091 = vmul.f32 %v1088, 1.442695
        %v1092 = vpow.pop %v1091
        %v1093 = vmul.f32 %v1089, 1.442695
        %v1094 = vpow.pop %v1093
        %v1095 = vmul.f32 %v1090, 1.442695
        %v1096 = vpow.pop %v1095
        %v1097 = vsel %vm519, %v1092, 0.0
        %1098 = vadd.xlane.f32.xlu0 %v1097
        %v1099 = vpop.xlane.xlu0 %1098
        %v1100 = vsel %vm519, %v1094, 0.0
        %1101 = vadd.xlane.f32.xlu0 %v1100
        %v1102 = vpop.xlane.xlu0 %1101
        %v1103 = vsel %vm526, %v1096, 0.0
        %1104 = vadd.xlane.f32.xlu0 %v1103
        %v1105 = vpop.xlane.xlu0 %1104
        %v1106 = vrcp.pop %v1099
        %v1107 = vmul.f32 %v1099, %v1106
        %v1108 = vsub.f32 1.0, %v1107
        %v1109 = vmul.f32 %v1106, %v1108
        %v1110 = vadd.f32 %v1106, %v1109
        %vm1111 = vweird.f32 %v1099
        %vm1112 = vweird.f32 %v1106
        %vm1113 = vmor %vm1111, %vm1112
        %v1114 = vsel %vm1113, %v1106, %v1110
        %v1115 = vand.u32 2147483647, %v1099
        %vm1116 = vcmp.eq.f32.partialorder %v1115, 8.507059e+37
        %v1117 = vand.u32 %v1099, 2147483648
        %v1118 = vor.u32 1.1754944e-38, %v1117
        %v1119 = vsel %vm1116, %v1118, %v1114
        %v1120 = vmul.f32 %v1092, %v1119
        %v1121 = vrcp.pop %v1102
        %v1122 = vmul.f32 %v1102, %v1121
        %v1123 = vsub.f32 1.0, %v1122
        %v1124 = vmul.f32 %v1121, %v1123
        %v1125 = vadd.f32 %v1121, %v1124
        %vm1126 = vweird.f32 %v1102
        %vm1127 = vweird.f32 %v1121
        %vm1128 = vmor %vm1126, %vm1127
        %v1129 = vsel %vm1128, %v1121, %v1125
        %v1130 = vand.u32 2147483647, %v1102
        %vm1131 = vcmp.eq.f32.partialorder %v1130, 8.507059e+37
        %v1132 = vand.u32 %v1102, 2147483648
        %v1133 = vor.u32 1.1754944e-38, %v1132
        %v1134 = vsel %vm1131, %v1133, %v1129
        %v1135 = vmul.f32 %v1094, %v1134
        %v1136 = vrcp.pop %v1105
        %v1137 = vmul.f32 %v1105, %v1136
        %v1138 = vsub.f32 1.0, %v1137
        %v1139 = vmul.f32 %v1136, %v1138
        %v1140 = vadd.f32 %v1136, %v1139
        %vm1141 = vweird.f32 %v1105
        %vm1142 = vweird.f32 %v1136
        %vm1143 = vmor %vm1141, %vm1142
        %v1144 = vsel %vm1143, %v1136, %v1140
        %v1145 = vand.u32 2147483647, %v1105
        %vm1146 = vcmp.eq.f32.partialorder %v1145, 8.507059e+37
        %v1147 = vand.u32 %v1105, 2147483648
        %v1148 = vor.u32 1.1754944e-38, %v1147
        %v1149 = vsel %vm1146, %v1148, %v1144
        %v1150 = vmul.f32 %v1096, %v1149
        %1151 = vrot.lane.b32.xlu0 %v454, 40
        %v1152 = vpop.permute.xlu0 %1151
        %1153 = vrot.lane.b32.xlu0 %v457, 40
        %v1154 = vpop.permute.xlu0 %1153
        %1155 = vrot.lane.b32.xlu0 %v460, 40
        %v1156 = vpop.permute.xlu0 %1155
        %v1160 = vsel %vm519, %v1120, 0
        %v1163 = vsel %vm519, %v1135, 0
        %v1166 = vsel %vm519, %v1150, 0
        %v1168 = vsel %vm610, %v1156, 0
        %1170 = vmatpush.msra.mxu0 0.0
        %1171 = vmatpush.msra.mxu0 0.0
        %1172 = vmatpush.msra.mxu0 0.0
        %1173 = vmatpush.msra.mxu0 0.0
        %1174 = vmatpush.msra.mxu0 0.0
        %1175 = vmatpush.msra.mxu0 0.0
        %1176 = vmatpush.msra.mxu0 0.0
        %1177 = vmatpush.msra.mxu0 0.0
        %1178 = vmatpush.msra.mxu0 0.0
        %1179 = vmatpush.msra.mxu0 0.0
        %1180 = vmatpush.msra.mxu0 0.0
        %1181 = vmatpush.msra.mxu0 0.0
        %1182 = vmatpush.msra.mxu0 0.0
        %1183 = vmatpush.msra.mxu0 %v1168
        %1184 = vmatpush.msra.mxu0 %v1154
        %1185 = vmatpush.msra.mxu0 %v1152
        %1186 = vmatmul.f32.gmra.mxu0 %v1160
        %v1187 = vpop.f32.mrf.mxu0
        %v1188 = vadd.f32 0.0, %v1187
        %1189 = vmatmul.f32.gmra.mxu0 %v1163
        %v1190 = vpop.f32.mrf.mxu0
        %v1191 = vadd.f32 0.0, %v1190
        %1192 = vmatmul.f32.gmra.mxu0 %v1166
        %v1193 = vpop.f32.mrf.mxu0
        %v1194 = vadd.f32 0.0, %v1193
        %1195 = vdwg.mxu0
        %1199 = vrot.lane.b32.xlu0 %v1188, 24
        %v1200 = vpop.permute.xlu0 %1199
        %1201 = vrot.lane.b32.xlu0 %v1191, 24
        %v1202 = vpop.permute.xlu0 %1201
        %1203 = vrot.lane.b32.xlu0 %v1194, 24
        %v1204 = vpop.permute.xlu0 %1203
        %vm1208 = vcmask 261312
        %1209 = vst.msk [vmem:[#allocation2] sm:$0xff] %vm1208, %v1200
        %1210 = vst.msk [vmem:[#allocation2 + $0x8] sm:$0xff] %vm1208, %v1202
        %vm1211 = vcmask 255168
        %1212 = vst.msk [vmem:[#allocation2 + $0x10] sm:$0x3] %vm1211, %v1204
        %v1213 = vld [vmem:[#allocation2] sm:$0xff]
        %v1214 = vld [vmem:[#allocation2 + $0x8] sm:$0xff]
        %v1215 = vld [vmem:[#allocation2 + $0x10] sm:$0x3]
        %v1216 = vld [vmem:[%s320 + $0x8] sm:$0xff]
        %v1217 = vld [vmem:[%s320 + $0x28] sm:$0xff]
        %v1218 = vld [vmem:[%s320 + $0x48] sm:$0xff]
        %v1219 = vld [vmem:[%s320 + $0x68] sm:$0xff]
        %v1220 = vperm.slane %v420, 1
        %v1222 = vsel %vm426, %v1213, 0
        %v1225 = vsel %vm426, %v1214, 0
        %v1228 = vsel %vm426, %v1215, 0
        %1230 = vmatpush.msra.mxu0 0.0
        %1231 = vmatpush.msra.mxu0 0.0
        %1232 = vmatpush.msra.mxu0 0.0
        %1233 = vmatpush.msra.mxu0 0.0
        %1234 = vmatpush.msra.mxu0 0.0
        %1235 = vmatpush.msra.mxu0 0.0
        %1236 = vmatpush.msra.mxu0 0.0
        %1237 = vmatpush.msra.mxu0 0.0
        %1238 = vmatpush.msra.mxu0 0.0
        %1239 = vmatpush.msra.mxu0 0.0
        %1240 = vmatpush.msra.mxu0 0.0
        %1241 = vmatpush.msra.mxu0 0.0
        %1242 = vmatpush.msra.mxu0 %v1219
        %1243 = vmatpush.msra.mxu0 %v1218
        %1244 = vmatpush.msra.mxu0 %v1217
        %1245 = vmatpush.msra.mxu0 %v1216
        %1246 = vmatmul.f32.gmra.mxu0 %v1222
        %v1247 = vpop.f32.mrf.mxu0
        %v1248 = vadd.f32 %v1220, %v1247
        %1249 = vmatmul.f32.gmra.mxu0 %v1225
        %v1250 = vpop.f32.mrf.mxu0
        %v1251 = vadd.f32 %v1220, %v1250
        %1252 = vmatmul.f32.gmra.mxu0 %v1228
        %v1253 = vpop.f32.mrf.mxu0
        %v1254 = vadd.f32 %v1220, %v1253
        %1255 = vdwg.mxu0
        %v1256 = vadd.f32 %v417, %v1248
        %v1257 = vadd.f32 %v418, %v1251
        %v1258 = vadd.f32 %v419, %v1254
        %v1259 = vsel %vm426, %v1256, 0.0
        %1260 = vadd.xlane.f32.xlu0 %v1259
        %v1261 = vpop.xlane.xlu0 %1260
        %v1262 = vsel %vm426, %v1257, 0.0
        %1263 = vadd.xlane.f32.xlu0 %v1262
        %v1264 = vpop.xlane.xlu0 %1263
        %vm1265 = vcmask 254976
        %v1266 = vsel %vm1265, %v1258, 0.0
        %1267 = vadd.xlane.f32.xlu0 %v1266
        %v1268 = vpop.xlane.xlu0 %1267
        %v1269 = vrcp.pop 32.0
        %v1270 = vmul.f32 32.0, %v1269
        %v1271 = vsub.f32 1.0, %v1270
        %v1272 = vmul.f32 %v1269, %v1271
        %v1273 = vadd.f32 %v1269, %v1272
        %vm1274 = vweird.f32 %v1269
        %v1275 = vsel %vm1274, %v1269, %v1273
        %v1276 = vmul.f32 %v1261, %v1275
        %v1277 = vmul.f32 %v1264, %v1275
        %v1278 = vmul.f32 %v1268, %v1275
        %v1279 = vsub.f32 %v1256, %v1276
        %v1280 = vsub.f32 %v1257, %v1277
        %v1281 = vsub.f32 %v1258, %v1278
        %v1282 = vmul.f32 %v1279, %v1279
        %v1283 = vmul.f32 %v1280, %v1280
        %v1284 = vmul.f32 %v1281, %v1281
        %v1285 = vsel %vm426, %v1282, 0.0
        %1286 = vadd.xlane.f32.xlu0 %v1285
        %v1287 = vpop.xlane.xlu0 %1286
        %v1288 = vsel %vm426, %v1283, 0.0
        %1289 = vadd.xlane.f32.xlu0 %v1288
        %v1290 = vpop.xlane.xlu0 %1289
        %v1291 = vsel %vm1265, %v1284, 0.0
        %1292 = vadd.xlane.f32.xlu0 %v1291
        %v1293 = vpop.xlane.xlu0 %1292
        %v1294 = vmul.f32 %v1287, %v1275
        %v1295 = vmul.f32 %v1290, %v1275
        %v1296 = vmul.f32 %v1293, %v1275
        %v1297 = vadd.f32 %v1294, 1e-05
        %v1298 = vadd.f32 %v1295, 1e-05
        %v1299 = vadd.f32 %v1296, 1e-05
        %v1300 = vrsqrt.pop %v1297
        %v1301 = vmul.f32 %v1300, %v1297
        %v1302 = vmul.f32 %v1301, %v1300
        %v1303 = vmul.f32 0.5, %v1302
        %v1304 = vsub.f32 1.5, %v1303
        %v1305 = vmul.f32 %v1300, %v1304
        %vm1306 = vweird.f32 %v1297
        %vm1307 = vweird.f32 %v1300
        %vm1308 = vmor %vm1306, %vm1307
        %v1309 = vsel %vm1308, %v1300, %v1305
        %v1310 = vrsqrt.pop %v1298
        %v1311 = vmul.f32 %v1310, %v1298
        %v1312 = vmul.f32 %v1311, %v1310
        %v1313 = vmul.f32 0.5, %v1312
        %v1314 = vsub.f32 1.5, %v1313
        %v1315 = vmul.f32 %v1310, %v1314
        %vm1316 = vweird.f32 %v1298
        %vm1317 = vweird.f32 %v1310
        %vm1318 = vmor %vm1316, %vm1317
        %v1319 = vsel %vm1318, %v1310, %v1315
        %v1320 = vrsqrt.pop %v1299
        %v1321 = vmul.f32 %v1320, %v1299
        %v1322 = vmul.f32 %v1321, %v1320
        %v1323 = vmul.f32 0.5, %v1322
        %v1324 = vsub.f32 1.5, %v1323
        %v1325 = vmul.f32 %v1320, %v1324
        %vm1326 = vweird.f32 %v1299
        %vm1327 = vweird.f32 %v1320
        %vm1328 = vmor %vm1326, %vm1327
        %v1329 = vsel %vm1328, %v1320, %v1325
        %v1330 = vmul.f32 %v1279, %v1309
        %v1331 = vmul.f32 %v1280, %v1319
        %v1332 = vmul.f32 %v1281, %v1329
        %v1333 = vperm.slane %v420, 2
        %v1334 = vmul.f32 %v1330, %v1333
        %v1335 = vmul.f32 %v1331, %v1333
        %v1336 = vmul.f32 %v1332, %v1333
        %v1337 = vperm.slane %v420, 3
        %v1338 = vadd.f32 %v1334, %v1337
        %v1339 = vadd.f32 %v1335, %v1337
        %v1340 = vadd.f32 %v1336, %v1337
        %v1341 = vld [vmem:[%s320 + $0x10] sm:$0xff]
        %v1342 = vld [vmem:[%s320 + $0x30] sm:$0xff]
        %v1343 = vld [vmem:[%s320 + $0x50] sm:$0xff]
        %v1344 = vld [vmem:[%s320 + $0x70] sm:$0xff]
        %v1345 = vperm.slane %v420, 4
        %v1347 = vsel %vm426, %v1338, 0
        %v1350 = vsel %vm426, %v1339, 0
        %v1353 = vsel %vm426, %v1340, 0
        %1355 = vmatpush.msra.mxu0 0.0
        %1356 = vmatpush.msra.mxu0 0.0
        %1357 = vmatpush.msra.mxu0 0.0
        %1358 = vmatpush.msra.mxu0 0.0
        %1359 = vmatpush.msra.mxu0 0.0
        %1360 = vmatpush.msra.mxu0 0.0
        %1361 = vmatpush.msra.mxu0 0.0
        %1362 = vmatpush.msra.mxu0 0.0
        %1363 = vmatpush.msra.mxu0 0.0
        %1364 = vmatpush.msra.mxu0 0.0
        %1365 = vmatpush.msra.mxu0 0.0
        %1366 = vmatpush.msra.mxu0 0.0
        %1367 = vmatpush.msra.mxu0 %v1344
        %1368 = vmatpush.msra.mxu0 %v1343
        %1369 = vmatpush.msra.mxu0 %v1342
        %1370 = vmatpush.msra.mxu0 %v1341
        %1371 = vmatmul.f32.gmra.mxu0 %v1347
        %v1372 = vpop.f32.mrf.mxu0
        %v1373 = vadd.f32 %v1345, %v1372
        %1374 = vmatmul.f32.gmra.mxu0 %v1350
        %v1375 = vpop.f32.mrf.mxu0
        %v1376 = vadd.f32 %v1345, %v1375
        %1377 = vmatmul.f32.gmra.mxu0 %v1353
        %v1378 = vpop.f32.mrf.mxu0
        %v1379 = vadd.f32 %v1345, %v1378
        %1380 = vdwg.mxu0
        %v1381 = vmul.f32 %v1373, 0.5
        %v1382 = vmul.f32 %v1376, 0.5
        %v1383 = vmul.f32 %v1379, 0.5
        %v1384 = vmul.f32 %v1373, 0.70710677
        %v1385 = vmul.f32 %v1376, 0.70710677
        %v1386 = vmul.f32 %v1379, 0.70710677
        %v1387 = vmul.f32 %v1384, %v1384
        %v1388 = vmin.f32 16.0, %v1387
        %v1389 = vmul.f32 %v1388, 2.1237322e-06
        %v1390 = vadd.f32 %v1389, 0.00028619796
        %v1391 = vmul.f32 %v1388, %v1390
        %v1392 = vadd.f32 %v1391, 0.0036580483
        %v1393 = vmul.f32 %v1388, %v1392
        %v1394 = vadd.f32 %v1393, 0.05243302
        %v1395 = vmul.f32 %v1388, %v1394
        %v1396 = vadd.f32 %v1395, 0.18741608
        %v1397 = vmul.f32 %v1388, %v1396
        %v1398 = vadd.f32 %v1397, 1.1283791
        %v1399 = vmul.f32 %v1384, %v1398
        %v1400 = vmul.f32 %v1388, 3.8918573e-05
        %v1401 = vadd.f32 %v1400, 0.001143296
        %v1402 = vmul.f32 %v1388, %v1401
        %v1403 = vadd.f32 %v1402, 0.014752088
        %v1404 = vmul.f32 %v1388, %v1403
        %v1405 = vadd.f32 %v1404, 0.112945676
        %v1406 = vmul.f32 %v1388, %v1405
        %v1407 = vadd.f32 %v1406, 0.4994258
        %v1408 = vmul.f32 %v1388, %v1407
        %v1409 = vadd.f32 %v1408, 1.0
        %v1410 = vrcp.pop %v1409
        %v1411 = vmul.f32 %v1409, %v1410
        %v1412 = vsub.f32 1.0, %v1411
        %v1413 = vmul.f32 %v1410, %v1412
        %v1414 = vadd.f32 %v1410, %v1413
        %vm1415 = vweird.f32 %v1409
        %vm1416 = vweird.f32 %v1410
        %vm1417 = vmor %vm1415, %vm1416
        %v1418 = vsel %vm1417, %v1410, %v1414
        %v1419 = vand.u32 2147483647, %v1409
        %vm1420 = vcmp.eq.f32.partialorder %v1419, 8.507059e+37
        %v1421 = vand.u32 %v1409, 2147483648
        %v1422 = vor.u32 1.1754944e-38, %v1421
        %v1423 = vsel %vm1420, %v1422, %v1418
        %v1424 = vmul.f32 %v1399, %v1423
        %v1425 = vmin.f32 %v1424, 1.0
        %v1426 = vmax.f32 %v1425, -1.0
        %v1427 = vmul.f32 %v1385, %v1385
        %v1428 = vmin.f32 16.0, %v1427
        %v1429 = vmul.f32 %v1428, 2.1237322e-06
        %v1430 = vadd.f32 %v1429, 0.00028619796
        %v1431 = vmul.f32 %v1428, %v1430
        %v1432 = vadd.f32 %v1431, 0.0036580483
        %v1433 = vmul.f32 %v1428, %v1432
        %v1434 = vadd.f32 %v1433, 0.05243302
        %v1435 = vmul.f32 %v1428, %v1434
        %v1436 = vadd.f32 %v1435, 0.18741608
        %v1437 = vmul.f32 %v1428, %v1436
        %v1438 = vadd.f32 %v1437, 1.1283791
        %v1439 = vmul.f32 %v1385, %v1438
        %v1440 = vmul.f32 %v1428, 3.8918573e-05
        %v1441 = vadd.f32 %v1440, 0.001143296
        %v1442 = vmul.f32 %v1428, %v1441
        %v1443 = vadd.f32 %v1442, 0.014752088
        %v1444 = vmul.f32 %v1428, %v1443
        %v1445 = vadd.f32 %v1444, 0.112945676
        %v1446 = vmul.f32 %v1428, %v1445
        %v1447 = vadd.f32 %v1446, 0.4994258
        %v1448 = vmul.f32 %v1428, %v1447
        %v1449 = vadd.f32 %v1448, 1.0
        %v1450 = vrcp.pop %v1449
        %v1451 = vmul.f32 %v1449, %v1450
        %v1452 = vsub.f32 1.0, %v1451
        %v1453 = vmul.f32 %v1450, %v1452
        %v1454 = vadd.f32 %v1450, %v1453
        %vm1455 = vweird.f32 %v1449
        %vm1456 = vweird.f32 %v1450
        %vm1457 = vmor %vm1455, %vm1456
        %v1458 = vsel %vm1457, %v1450, %v1454
        %v1459 = vand.u32 2147483647, %v1449
        %vm1460 = vcmp.eq.f32.partialorder %v1459, 8.507059e+37
        %v1461 = vand.u32 %v1449, 2147483648
        %v1462 = vor.u32 1.1754944e-38, %v1461
        %v1463 = vsel %vm1460, %v1462, %v1458
        %v1464 = vmul.f32 %v1439, %v1463
        %v1465 = vmin.f32 %v1464, 1.0
        %v1466 = vmax.f32 %v1465, -1.0
        %v1467 = vmul.f32 %v1386, %v1386
        %v1468 = vmin.f32 16.0, %v1467
        %v1469 = vmul.f32 %v1468, 2.1237322e-06
        %v1470 = vadd.f32 %v1469, 0.00028619796
        %v1471 = vmul.f32 %v1468, %v1470
        %v1472 = vadd.f32 %v1471, 0.0036580483
        %v1473 = vmul.f32 %v1468, %v1472
        %v1474 = vadd.f32 %v1473, 0.05243302
        %v1475 = vmul.f32 %v1468, %v1474
        %v1476 = vadd.f32 %v1475, 0.18741608
        %v1477 = vmul.f32 %v1468, %v1476
        %v1478 = vadd.f32 %v1477, 1.1283791
        %v1479 = vmul.f32 %v1386, %v1478
        %v1480 = vmul.f32 %v1468, 3.8918573e-05
        %v1481 = vadd.f32 %v1480, 0.001143296
        %v1482 = vmul.f32 %v1468, %v1481
        %v1483 = vadd.f32 %v1482, 0.014752088
        %v1484 = vmul.f32 %v1468, %v1483
        %v1485 = vadd.f32 %v1484, 0.112945676
        %v1486 = vmul.f32 %v1468, %v1485
        %v1487 = vadd.f32 %v1486, 0.4994258
        %v1488 = vmul.f32 %v1468, %v1487
        %v1489 = vadd.f32 %v1488, 1.0
        %v1490 = vrcp.pop %v1489
        %v1491 = vmul.f32 %v1489, %v1490
        %v1492 = vsub.f32 1.0, %v1491
        %v1493 = vmul.f32 %v1490, %v1492
        %v1494 = vadd.f32 %v1490, %v1493
        %vm1495 = vweird.f32 %v1489
        %vm1496 = vweird.f32 %v1490
        %vm1497 = vmor %vm1495, %vm1496
        %v1498 = vsel %vm1497, %v1490, %v1494
        %v1499 = vand.u32 2147483647, %v1489
        %vm1500 = vcmp.eq.f32.partialorder %v1499, 8.507059e+37
        %v1501 = vand.u32 %v1489, 2147483648
        %v1502 = vor.u32 1.1754944e-38, %v1501
        %v1503 = vsel %vm1500, %v1502, %v1498
        %v1504 = vmul.f32 %v1479, %v1503
        %v1505 = vmin.f32 %v1504, 1.0
        %v1506 = vmax.f32 %v1505, -1.0
        %v1507 = vadd.f32 %v1426, 1.0
        %v1508 = vadd.f32 %v1466, 1.0
        %v1509 = vadd.f32 %v1506, 1.0
        %v1510 = vmul.f32 %v1381, %v1507
        %v1511 = vmul.f32 %v1382, %v1508
        %v1512 = vmul.f32 %v1383, %v1509
        %v1513 = vld [vmem:[%s320 + $0x18] sm:$0xff]
        %v1514 = vld [vmem:[%s320 + $0x38] sm:$0xff]
        %v1515 = vld [vmem:[%s320 + $0x58] sm:$0xff]
        %v1516 = vld [vmem:[%s320 + $0x78] sm:$0xff]
        %v1517 = vperm.slane %v420, 5
        %vm1518 = vcmask 523264
        %v1520 = vsel %vm1518, %v1510, 0
        %v1523 = vsel %vm1518, %v1511, 0
        %v1526 = vsel %vm1518, %v1512, 0
        %v1529 = vsel %vm1518, %v1513, 0
        %v1532 = vsel %vm1518, %v1514, 0
        %v1535 = vsel %vm1518, %v1515, 0
        %v1538 = vsel %vm1518, %v1516, 0
        %1540 = vmatpush.xpose.msra.mxu0 0.0
        %1541 = vmatpush.xpose.msra.mxu0 0.0
        %1542 = vmatpush.xpose.msra.mxu0 0.0
        %1543 = vmatpush.xpose.msra.mxu0 0.0
        %1544 = vmatpush.xpose.msra.mxu0 0.0
        %1545 = vmatpush.xpose.msra.mxu0 0.0
        %1546 = vmatpush.xpose.msra.mxu0 0.0
        %1547 = vmatpush.xpose.msra.mxu0 0.0
        %1548 = vmatpush.xpose.msra.mxu0 0.0
        %1549 = vmatpush.xpose.msra.mxu0 0.0
        %1550 = vmatpush.xpose.msra.mxu0 0.0
        %1551 = vmatpush.xpose.msra.mxu0 0.0
        %1552 = vmatpush.xpose.msra.mxu0 %v1538
        %1553 = vmatpush.xpose.msra.mxu0 %v1535
        %1554 = vmatpush.xpose.msra.mxu0 %v1532
        %1555 = vmatpush.xpose.msra.mxu0 %v1529
        %1556 = vmatmul.f32.gmra.mxu0 %v1520
        %v1557 = vpop.f32.mrf.mxu0
        %v1558 = vadd.f32 %v1517, %v1557
        %1559 = vmatmul.f32.gmra.mxu0 %v1523
        %v1560 = vpop.f32.mrf.mxu0
        %v1561 = vadd.f32 %v1517, %v1560
        %1562 = vmatmul.f32.gmra.mxu0 %v1526
        %v1563 = vpop.f32.mrf.mxu0
        %v1564 = vadd.f32 %v1517, %v1563
        %1565 = vdwg.mxu0
        %v1566 = vadd.f32 %v1338, %v1558
        %v1567 = vadd.f32 %v1339, %v1561
        %v1568 = vadd.f32 %v1340, %v1564
        %v1569 = vsel %vm426, %v1566, 0.0
        %1570 = vadd.xlane.f32.xlu0 %v1569
        %v1571 = vpop.xlane.xlu0 %1570
        %v1572 = vsel %vm426, %v1567, 0.0
        %1573 = vadd.xlane.f32.xlu0 %v1572
        %v1574 = vpop.xlane.xlu0 %1573
        %v1575 = vsel %vm1265, %v1568, 0.0
        %1576 = vadd.xlane.f32.xlu0 %v1575
        %v1577 = vpop.xlane.xlu0 %1576
        %v1578 = vmul.f32 %v1571, %v1275
        %v1579 = vmul.f32 %v1574, %v1275
        %v1580 = vmul.f32 %v1577, %v1275
        %v1581 = vsub.f32 %v1566, %v1578
        %v1582 = vsub.f32 %v1567, %v1579
        %v1583 = vsub.f32 %v1568, %v1580
        %v1584 = vmul.f32 %v1581, %v1581
        %v1585 = vmul.f32 %v1582, %v1582
        %v1586 = vmul.f32 %v1583, %v1583
        %v1587 = vsel %vm426, %v1584, 0.0
        %1588 = vadd.xlane.f32.xlu0 %v1587
        %v1589 = vpop.xlane.xlu0 %1588
        %v1590 = vsel %vm426, %v1585, 0.0
        %1591 = vadd.xlane.f32.xlu0 %v1590
        %v1592 = vpop.xlane.xlu0 %1591
        %v1593 = vsel %vm1265, %v1586, 0.0
        %1594 = vadd.xlane.f32.xlu0 %v1593
        %v1595 = vpop.xlane.xlu0 %1594
        %v1596 = vmul.f32 %v1589, %v1275
        %v1597 = vmul.f32 %v1592, %v1275
        %v1598 = vmul.f32 %v1595, %v1275
        %v1599 = vadd.f32 %v1596, 1e-05
        %v1600 = vadd.f32 %v1597, 1e-05
        %v1601 = vadd.f32 %v1598, 1e-05
        %v1602 = vrsqrt.pop %v1599
        %v1603 = vmul.f32 %v1602, %v1599
        %v1604 = vmul.f32 %v1603, %v1602
        %v1605 = vmul.f32 0.5, %v1604
        %v1606 = vsub.f32 1.5, %v1605
        %v1607 = vmul.f32 %v1602, %v1606
        %vm1608 = vweird.f32 %v1599
        %vm1609 = vweird.f32 %v1602
        %vm1610 = vmor %vm1608, %vm1609
        %v1611 = vsel %vm1610, %v1602, %v1607
        %v1612 = vrsqrt.pop %v1600
        %v1613 = vmul.f32 %v1612, %v1600
        %v1614 = vmul.f32 %v1613, %v1612
        %v1615 = vmul.f32 0.5, %v1614
        %v1616 = vsub.f32 1.5, %v1615
        %v1617 = vmul.f32 %v1612, %v1616
        %vm1618 = vweird.f32 %v1600
        %vm1619 = vweird.f32 %v1612
        %vm1620 = vmor %vm1618, %vm1619
        %v1621 = vsel %vm1620, %v1612, %v1617
        %v1622 = vrsqrt.pop %v1601
        %v1623 = vmul.f32 %v1622, %v1601
        %v1624 = vmul.f32 %v1623, %v1622
        %v1625 = vmul.f32 0.5, %v1624
        %v1626 = vsub.f32 1.5, %v1625
        %v1627 = vmul.f32 %v1622, %v1626
        %vm1628 = vweird.f32 %v1601
        %vm1629 = vweird.f32 %v1622
        %vm1630 = vmor %vm1628, %vm1629
        %v1631 = vsel %vm1630, %v1622, %v1627
        %v1632 = vmul.f32 %v1581, %v1611
        %v1633 = vmul.f32 %v1582, %v1621
        %v1634 = vmul.f32 %v1583, %v1631
        %v1635 = vperm.slane %v420, 6
        %v1636 = vmul.f32 %v1632, %v1635
        %v1637 = vmul.f32 %v1633, %v1635
        %v1638 = vmul.f32 %v1634, %v1635
        %v1639 = vperm.slane %v420, 7
        %v1640 = vadd.f32 %v1636, %v1639
        %v1641 = vadd.f32 %v1637, %v1639
        %v1642 = vadd.f32 %v1638, %v1639
        %1643 = vst.msk [vmem:[#allocation13] sm:$0xff] %vm426, %v1640
        %1644 = vst.msk [vmem:[#allocation13 + $0x8] sm:$0xff] %vm426, %v1641
        %1645 = vst.msk [vmem:[#allocation13 + $0x10] sm:$0x3] %vm1265, %v1642
        // Predicated region
        $region73: #{tpu_custom_call.1} parent=43 // pred_check
          %p1646 = pneg %p170
        $region74: #{tpu_custom_call.1} parent=43 // pred_check_branch
          %1648 = sbr.rel (%p1646) target = $region76
        $region75: #{tpu_custom_call.1} parent=43 // pred_region
          %1650 = vsyncadd [#allocation5], 0
          %s1651 = sshll.u32 [#allocation13], 4
          %s1652 = int_to_ptr.vmem [resolvable:$true] %s1651
          %s1653 = sshll.u32 %s6, 4
          %s1654 = int_to_ptr.hbm [resolvable:$true] %s1653
          %1659 = dma.vmem_to_hbm [thread:$0]  %s1652, 384, %s1654, [#allocation5], 128, 128, 8
        $region76: #{tpu_custom_call.1} parent=43 // pred_fallthru
          _
        // Predicated region
        $region77: #{tpu_custom_call.1} parent=43 // pred_check
          %p1660 = pneg %p170
        $region78: #{tpu_custom_call.1} parent=43 // pred_check_branch
          %1662 = sbr.rel (%p1660) target = $region80
        $region79: #{tpu_custom_call.1} parent=43 // pred_region
          %1664 = dma.done [#allocation5], 384
        $region80: #{tpu_custom_call.1} parent=43 // pred_fallthru
          _
      $region44: #{tpu_custom_call.1} parent=5 // pred_fallthru
        _
      %p1665 = scmp.le.s32.totalorder 2, %s16
      // Predicated region
      $region81: #{tpu_custom_call.1} parent=5 // pred_check
        %p1666 = pneg %p1665
      $region82: #{tpu_custom_call.1} parent=5 // pred_check_branch
        %1668 = sbr.rel (%p1666) target = $region84
      $region83: #{tpu_custom_call.1} parent=5 // pred_region
        %s1669 = ssub.s32 %s16, 2
      $region84: #{tpu_custom_call.1} parent=5 // pred_fallthru
        _
    $region6: #{tpu_custom_call.1} parent=1 // loop_footer
      %s20 = sadd.s32 1, %s16
    $region7: #{tpu_custom_call.1} parent=1 // loop_footer_branch
      %15 = sbr.rel target = $region3
    $region8: #{tpu_custom_call.1} parent=1 // loop_exit
      _
    %1670 = vsyncpa [#allocation4], 1
    %s1671 = scalar_lea.sflag [#allocation4], 1
    %1672 = vsyncpa %s1671, 1
    %1673 = vsyncpa [#allocation7], 1
    %1674 = vsyncpa [#allocation10], 1
    %1675 = vsyncpa [#allocation5], 1
    %s1676 = scalar_lea.sflag [#allocation5], 1
    %1677 = vsyncpa %s1676, 1

</llo_original>
